<compile_context>
chip_gen: v7x
topology: tpu7x:2x2x1
jax: 0.10.0
libtpu: 0.0.40
codegen_flags: <defaults>
</compile_context>

<pallas_src>
import functools

import jax
import jax.numpy as jnp
from jax.experimental import pallas as pl
from jax.experimental.pallas import tpu as pltpu


def sae_kernel(x_ref, we_ref, be_ref, wd_ref, bd_ref, rec_ref, feat_ref, *scratch):
    # If the reconstruction output is f32 we accumulate directly into it (the
    # rec block is resident across the hidden axis j); otherwise an f32 VMEM
    # scratch accumulator is appended via scratch_shapes.
    acc_ref = scratch[0] if scratch else rec_ref
    j = pl.program_id(1)                              # hidden-tile (reduction) index

    # ---- Encoder tile: (tb, D_in) @ (D_in, th) on the MXU, f32 accumulation ----
    h = jnp.dot(x_ref[...], we_ref[...], preferred_element_type=jnp.float32)
    f = jnp.maximum(h + be_ref[...], 0.0)             # f32 bias add + ReLU (VPU)
    feat_ref[...] = f.astype(feat_ref.dtype)

    # ---- Decoder partial: (tb, th) @ (th, D_in), accumulated over j ----------
    partial = jnp.dot(f.astype(wd_ref.dtype), wd_ref[...],
                      preferred_element_type=jnp.float32)

    @pl.when(j == 0)
    def _first():
        acc_ref[...] = partial.astype(acc_ref.dtype)

    @pl.when(j > 0)
    def _accumulate():
        acc_ref[...] += partial.astype(acc_ref.dtype)

    @pl.when(j == pl.num_programs(1) - 1)
    def _finalize():
        rec_ref[...] = (acc_ref[...].astype(jnp.float32) + bd_ref[...]
                        ).astype(rec_ref.dtype)


def _pick_block(total, target, align):
    """Largest multiple of `align` dividing `total`, <= max(target, align).

    Falls back to the full extent when `total` is not a multiple of `align`
    (full-extent blocks are always legal wrt the (8,128)/(16,128) constraint).
    """
    if total % align:
        # TODO(synk): pad with pl.cdiv + in-kernel masking for ragged dims.
        return total
    b = max(align, min(total, (target // align) * align))
    while total % b:
        b -= align
    return b


@functools.partial(
    jax.jit, static_argnames=("block_b", "block_h", "compute_dtype", "feat_dtype"))
def sae_forward(x, w_enc, b_enc, w_dec, b_dec, *,
                block_b=256, block_h=512,
                compute_dtype=jnp.bfloat16, feat_dtype=None):
    """Fused SAE forward.  Weights pre-transposed: w_enc (D_in,D_hid), w_dec (D_hid,D_in)."""
    B, D_in = x.shape
    D_hid = w_enc.shape[1]
    cd = jnp.dtype(compute_dtype)
    rec_dtype = x.dtype
    feat_dtype = jnp.dtype(feat_dtype) if feat_dtype is not None else jnp.dtype(x.dtype)

    # ---- Tile selection (hardened: sublane/lane aligned) ---------------------
    align_b = 8 if cd.itemsize >= 4 else 16           # f32 -> 8, bf16 -> 16 sublanes
    tb = _pick_block(B, block_b, align_b)
    # Keep >= 2 batch tiles when possible so the "parallel" batch axis can be
    # sharded across both TensorCores on v7x (and pipelines on all chips).
    if tb == B and (B % align_b == 0) and B >= 2 * align_b:
        tb = _pick_block(B, B // 2, align_b)
    th = _pick_block(D_hid, block_h, 128)             # lane-dense hidden tiles
    grid = (B // tb, D_hid // th)

    # ---- Wrapper-side casts: halve activation + weight HBM traffic -----------
    x_c = x.astype(compute_dtype)
    w_enc_c = w_enc.astype(compute_dtype)
    w_dec_c = w_dec.astype(compute_dtype)
    b_enc2 = b_enc.reshape(1, D_hid).astype(jnp.float32)
    b_dec2 = b_dec.reshape(1, D_in).astype(jnp.float32)

    use_acc_scratch = jnp.dtype(rec_dtype) != jnp.dtype(jnp.float32)
    rec_isz = jnp.dtype(rec_dtype).itemsize
    feat_isz = feat_dtype.itemsize

    # ---- Generation-aware VMEM budget -----------------------------------------
    block_bytes = 2 * (tb * D_in * cd.itemsize        # x (double-buffered)
                       + D_in * th * cd.itemsize      # W_enc tile
                       + th * 4 + D_in * 4            # biases
                       + th * D_in * cd.itemsize      # W_dec tile
                       + tb * D_in * rec_isz          # rec block
                       + tb * th * feat_isz)          # feat block
    scratch_bytes = tb * D_in * 4 if use_acc_scratch else 0
    try:
        vmem_cap = getattr(pltpu.get_tpu_info(), "vmem_capacity_bytes",
                           64 * 1024 * 1024)
    except Exception:
        vmem_cap = 64 * 1024 * 1024                   # conservative: v7x per-TC VMEM
    vmem_limit = max(2 * (block_bytes + scratch_bytes) + (8 << 20), 32 << 20)
    vmem_limit = int(min(vmem_limit, vmem_cap - (16 << 20)))

    # ---- Cost estimate (includes the (B/tb)x weight re-streaming) -------------
    n_btiles = grid[0]
    cost = pl.CostEstimate(
        flops=4 * B * D_in * D_hid,                   # two matmuls
        transcendentals=0,
        bytes_accessed=int(B * D_in * cd.itemsize
                           + n_btiles * (w_enc.size + w_dec.size) * cd.itemsize
                           + n_btiles * (b_enc.size + b_dec.size) * 4
                           + B * D_in * rec_isz       # reconstruction out
                           + B * D_hid * feat_isz),   # features out
    )

    scratch_shapes = ([pltpu.VMEM((tb, D_in), jnp.float32)] if use_acc_scratch
                      else [])

    rec, feat = pl.pallas_call(
        sae_kernel,
        out_shape=(
            jax.ShapeDtypeStruct((B, D_in), rec_dtype),    # reconstruction
            jax.ShapeDtypeStruct((B, D_hid), feat_dtype),  # features
        ),
        grid_spec=pltpu.PrefetchScalarGridSpec(
            num_scalar_prefetch=0,
            grid=grid,
            in_specs=[
                pl.BlockSpec((tb, D_in), lambda i, j: (i, 0)),  # x (resident over j)
                pl.BlockSpec((D_in, th), lambda i, j: (0, j)),  # encoder weight tile
                pl.BlockSpec((1, th), lambda i, j: (0, j)),     # encoder bias tile
                pl.BlockSpec((th, D_in), lambda i, j: (j, 0)),  # decoder weight tile
                pl.BlockSpec((1, D_in), lambda i, j: (0, 0)),   # decoder bias (resident)
            ],
            out_specs=[
                pl.BlockSpec((tb, D_in), lambda i, j: (i, 0)),  # rec (resident over j)
                pl.BlockSpec((tb, th), lambda i, j: (i, j)),    # feat tile
            ],
            scratch_shapes=scratch_shapes,
        ),
        compiler_params=pltpu.CompilerParams(
            dimension_semantics=("parallel", "arbitrary"),   # batch parallel, hidden reduce
            vmem_limit_bytes=vmem_limit,
        ),
        cost_estimate=cost,
    )(x_c, w_enc_c, b_enc2, w_dec_c, b_dec2)
    return rec, feat


def init_sae_params(key, input_size, hidden_size, init_scale=0.1):
    """Deterministic synthetic init (PyTorch nn.Linear shapes, pre-transposed)."""
    k1, k2, k3, k4 = jax.random.split(key, 4)
    # PyTorch: encode.weight (hidden, input) -> transpose to (input, hidden)
    w_enc = (init_scale * jax.random.normal(k1, (hidden_size, input_size), jnp.float32)).T
    b_enc = init_scale * jax.random.normal(k2, (hidden_size,), jnp.float32)
    # PyTorch: decode.weight (input, hidden) -> transpose to (hidden, input)
    w_dec = (init_scale * jax.random.normal(k3, (input_size, hidden_size), jnp.float32)).T
    b_dec = init_scale * jax.random.normal(k4, (input_size,), jnp.float32)
    return w_enc, b_enc, w_dec, b_dec


if __name__ == "__main__":
    # Small, lane-dense shapes (multiples of 128); hidden axis gives the
    # reduction 2 grid steps with the default th=512.
    B, D_in, D_hid = 256, 256, 1024

    key = jax.random.PRNGKey(0)
    kx, kp = jax.random.split(key)
    x = jax.random.normal(kx, (B, D_in), jnp.float32)
    w_enc, b_enc, w_dec, b_dec = init_sae_params(kp, D_in, D_hid)

    # Pure-JAX reference of the forward semantics.
    feat_ref = jnp.maximum(x @ w_enc + b_enc, 0.0)
    rec_ref = feat_ref @ w_dec + b_dec

    # 1) f32 compute path: tight precision check (direct-into-output accumulation).
    rec32, feat32 = sae_forward(x, w_enc, b_enc, w_dec, b_dec,
                                compute_dtype=jnp.float32)
    jax.block_until_ready((rec32, feat32))
    assert rec32.shape == (B, D_in) and feat32.shape == (B, D_hid)
    assert jnp.allclose(rec32, rec_ref, atol=1e-4, rtol=1e-4)
    assert jnp.allclose(feat32, feat_ref, atol=1e-4, rtol=1e-4)

    # 2) bf16 compute path (default), bf16 feature output: loose check.
    rec_bf, feat_bf = sae_forward(x, w_enc, b_enc, w_dec, b_dec,
                                  compute_dtype=jnp.bfloat16,
                                  feat_dtype=jnp.bfloat16)
    jax.block_until_ready((rec_bf, feat_bf))
    assert rec_bf.dtype == x.dtype and feat_bf.dtype == jnp.dtype(jnp.bfloat16)
    assert jnp.allclose(rec_bf, rec_ref, atol=1e-1, rtol=1e-1)
    assert jnp.allclose(feat_bf.astype(jnp.float32), feat_ref, atol=1e-1, rtol=1e-1)

    # 3) bf16 input/output path: exercises the f32 scratch-accumulator branch.
    xb = x.astype(jnp.bfloat16)
    rec_b, feat_b = sae_forward(xb, w_enc, b_enc, w_dec, b_dec)
    jax.block_until_ready((rec_b, feat_b))
    assert rec_b.dtype == jnp.dtype(jnp.bfloat16)
    assert jnp.allclose(rec_b.astype(jnp.float32), rec_ref, atol=2e-1, rtol=2e-1)

    print("KERNEL_OK")
</pallas_src>

<mosaic_0001>
module attributes {stable_mosaic.version = 11 : i64} {
  func.func @sae_kernel(%arg0: i32, %arg1: i32, %arg2: memref<128x256xf32, #tpu.memory_space<vmem>>, %arg3: memref<256x512xf32, #tpu.memory_space<vmem>>, %arg4: memref<1x512xf32, #tpu.memory_space<vmem>>, %arg5: memref<512x256xf32, #tpu.memory_space<vmem>>, %arg6: memref<1x256xf32, #tpu.memory_space<vmem>>, %arg7: memref<128x256xf32, #tpu.memory_space<vmem>>, %arg8: memref<128x512xf32, #tpu.memory_space<vmem>>) attributes {dimension_semantics = [#tpu.dimension_semantics<parallel>, #tpu.dimension_semantics<arbitrary>], iteration_bounds = array<i64: 2, 2>, scalar_prefetch = 0 : i64, scratch_operands = 0 : i64, tpu.core_type = #tpu.core_type<tc>, window_params = [{transform_indices = @transform_0, window_bounds = array<i64: 128, 256>}, {transform_indices = @transform_1, window_bounds = array<i64: 256, 512>}, {transform_indices = @transform_2, window_bounds = array<i64: 1, 512>}, {transform_indices = @transform_3, window_bounds = array<i64: 512, 256>}, {pipeline_mode = #tpu.pipeline_mode<synchronous>, transform_indices = @transform_4, window_bounds = array<i64: 1, 256>}, {transform_indices = @transform_5, window_bounds = array<i64: 128, 256>}, {transform_indices = @transform_6, window_bounds = array<i64: 128, 512>}]} {
    %c0 = arith.constant 0 : index
    %c0_0 = arith.constant 0 : index
    %0 = vector.load %arg2[%c0, %c0_0] : memref<128x256xf32, #tpu.memory_space<vmem>>, vector<128x256xf32>
    %c0_1 = arith.constant 0 : index
    %c0_2 = arith.constant 0 : index
    %1 = vector.load %arg3[%c0_1, %c0_2] : memref<256x512xf32, #tpu.memory_space<vmem>>, vector<256x512xf32>
    %cst = arith.constant dense<0.000000e+00> : vector<128x512xf32>
    %2 = tpu.matmul %0, %1, %cst {dimension_numbers = #tpu.dot_dimension_numbers<[1], [0], [0], [1], [0, 0, 1, 1], [], []>} : vector<128x256xf32>, vector<256x512xf32>, vector<128x512xf32> -> vector<128x512xf32>
    %c0_3 = arith.constant 0 : index
    %c0_4 = arith.constant 0 : index
    %3 = vector.load %arg4[%c0_3, %c0_4] : memref<1x512xf32, #tpu.memory_space<vmem>>, vector<1x512xf32>
    %4 = vector.broadcast %3 : vector<1x512xf32> to vector<128x512xf32>
    %5 = arith.addf %2, %4 : vector<128x512xf32>
    %cst_5 = arith.constant 0.000000e+00 : f32
    %6 = vector.broadcast %cst_5 : f32 to vector<128x512xf32>
    %7 = arith.maximumf %5, %6 : vector<128x512xf32>
    %c0_6 = arith.constant 0 : index
    %c0_7 = arith.constant 0 : index
    %8 = vector.load %arg8[%c0_6, %c0_7] : memref<128x512xf32, #tpu.memory_space<vmem>>, vector<128x512xf32>
    tpu.vector_store %arg8[%c0_6, %c0_7], %7 {strides = array<i32>} : memref<128x512xf32, #tpu.memory_space<vmem>>, vector<128x512xf32>,
    %c0_8 = arith.constant 0 : index
    %c0_9 = arith.constant 0 : index
    %9 = vector.load %arg5[%c0_8, %c0_9] : memref<512x256xf32, #tpu.memory_space<vmem>>, vector<512x256xf32>
    %cst_10 = arith.constant dense<0.000000e+00> : vector<128x256xf32>
    %10 = tpu.matmul %7, %9, %cst_10 {dimension_numbers = #tpu.dot_dimension_numbers<[1], [0], [0], [1], [0, 0, 1, 1], [], []>} : vector<128x512xf32>, vector<512x256xf32>, vector<128x256xf32> -> vector<128x256xf32>
    %c0_i32 = arith.constant 0 : i32
    %11 = arith.cmpi eq, %arg1, %c0_i32 : i32
    %12 = arith.extui %11 : i1 to i32
    %c0_i32_11 = arith.constant 0 : i32
    %13 = arith.cmpi ne, %12, %c0_i32_11 : i32
    scf.if %13 {
      %c0_15 = arith.constant 0 : index
      %c0_16 = arith.constant 0 : index
      %20 = vector.load %arg7[%c0_15, %c0_16] : memref<128x256xf32, #tpu.memory_space<vmem>>, vector<128x256xf32>
      tpu.vector_store %arg7[%c0_15, %c0_16], %10 {strides = array<i32>} : memref<128x256xf32, #tpu.memory_space<vmem>>, vector<128x256xf32>,
    } else {
    }
    %c0_i32_12 = arith.constant 0 : i32
    %14 = arith.cmpi sgt, %arg1, %c0_i32_12 : i32
    %15 = arith.extui %14 : i1 to i32
    %c0_i32_13 = arith.constant 0 : i32
    %16 = arith.cmpi ne, %15, %c0_i32_13 : i32
    scf.if %16 {
      %c0_15 = arith.constant 0 : index
      %c0_16 = arith.constant 0 : index
      %20 = vector.load %arg7[%c0_15, %c0_16] : memref<128x256xf32, #tpu.memory_space<vmem>>, vector<128x256xf32>
      %21 = arith.addf %20, %10 : vector<128x256xf32>
      %c0_17 = arith.constant 0 : index
      %c0_18 = arith.constant 0 : index
      %22 = vector.load %arg7[%c0_17, %c0_18] : memref<128x256xf32, #tpu.memory_space<vmem>>, vector<128x256xf32>
      tpu.vector_store %arg7[%c0_17, %c0_18], %21 {strides = array<i32>} : memref<128x256xf32, #tpu.memory_space<vmem>>, vector<128x256xf32>,
    } else {
    }
    %c1_i32 = arith.constant 1 : i32
    %17 = arith.cmpi eq, %arg1, %c1_i32 : i32
    %18 = arith.extui %17 : i1 to i32
    %c0_i32_14 = arith.constant 0 : i32
    %19 = arith.cmpi ne, %18, %c0_i32_14 : i32
    scf.if %19 {
      %c0_15 = arith.constant 0 : index
      %c0_16 = arith.constant 0 : index
      %20 = vector.load %arg7[%c0_15, %c0_16] : memref<128x256xf32, #tpu.memory_space<vmem>>, vector<128x256xf32>
      %c0_17 = arith.constant 0 : index
      %c0_18 = arith.constant 0 : index
      %21 = vector.load %arg6[%c0_17, %c0_18] : memref<1x256xf32, #tpu.memory_space<vmem>>, vector<1x256xf32>
      %22 = vector.broadcast %21 : vector<1x256xf32> to vector<128x256xf32>
      %23 = arith.addf %20, %22 : vector<128x256xf32>
      %c0_19 = arith.constant 0 : index
      %c0_20 = arith.constant 0 : index
      %24 = vector.load %arg7[%c0_19, %c0_20] : memref<128x256xf32, #tpu.memory_space<vmem>>, vector<128x256xf32>
      tpu.vector_store %arg7[%c0_19, %c0_20], %23 {strides = array<i32>} : memref<128x256xf32, #tpu.memory_space<vmem>>, vector<128x256xf32>,
    } else {
    }
    return
  }
  func.func @transform_0(%arg0: i32, %arg1: i32) -> (i32, i32) {
    %c0_i32 = arith.constant 0 : i32
    %c0_i32_0 = arith.constant 0 : i32
    return %arg0, %c0_i32 : i32, i32
  }
  func.func @transform_1(%arg0: i32, %arg1: i32) -> (i32, i32) {
    %c0_i32 = arith.constant 0 : i32
    %c0_i32_0 = arith.constant 0 : i32
    return %c0_i32, %arg1 : i32, i32
  }
  func.func @transform_2(%arg0: i32, %arg1: i32) -> (i32, i32) {
    %c0_i32 = arith.constant 0 : i32
    %c0_i32_0 = arith.constant 0 : i32
    return %c0_i32, %arg1 : i32, i32
  }
  func.func @transform_3(%arg0: i32, %arg1: i32) -> (i32, i32) {
    %c0_i32 = arith.constant 0 : i32
    %c0_i32_0 = arith.constant 0 : i32
    return %arg1, %c0_i32 : i32, i32
  }
  func.func @transform_4(%arg0: i32, %arg1: i32) -> (i32, i32) {
    %c0_i32 = arith.constant 0 : i32
    %c0_i32_0 = arith.constant 0 : i32
    %c0_i32_1 = arith.constant 0 : i32
    return %c0_i32, %c0_i32_0 : i32, i32
  }
  func.func @transform_5(%arg0: i32, %arg1: i32) -> (i32, i32) {
    %c0_i32 = arith.constant 0 : i32
    %c0_i32_0 = arith.constant 0 : i32
    return %arg0, %c0_i32 : i32, i32
  }
  func.func @transform_6(%arg0: i32, %arg1: i32) -> (i32, i32) {
    %c0_i32 = arith.constant 0 : i32
    return %arg0, %arg1 : i32, i32
  }
}

</mosaic_0001>

<llo_original>
// kernel: sae_forward.1
$region0: #{sae_forward.1}
  #allocation0 [shape = 'u32[]', space=smem, size = 0x4, offset = 0x4, fixed_abs, tag = 'smem constant byte address 0x4 - core index']
  #allocation1 [shape = 'u32[144,128]{1,0:T(1,128)}', space=vmem, size = 0x12000, scoped, tag = 'internal scratch']
  %s0 = inlined_call_operand.hbm [shape: f32[256,256], index: 0, kind: input, shape index: {}]
  %s1 = inlined_call_operand.hbm [shape: f32[256,1024], index: 1, kind: input, shape index: {}]
  %s2 = inlined_call_operand.vmem [shape: f32[1,1024], index: 2, kind: input, shape index: {}]
  %s3 = inlined_call_operand.hbm [shape: f32[1024,256], index: 3, kind: input, shape index: {}]
  %s4 = inlined_call_operand.vmem [shape: f32[1,256], index: 4, kind: input, shape index: {}]
  %s5 = inlined_call_operand.hbm [shape: f32[256,256], index: 5, kind: output, shape index: {0}]
  %s6 = inlined_call_operand.hbm [shape: f32[256,1024], index: 6, kind: output, shape index: {1}]
  %7 = xla_tuple %s5, %s6
  %s8 = sld [smem:[#allocation0]]
  $region85: #{sae_forward.1} parent=0
    _
  %s10 = ssub.s32 1, %s8
  %s11 = scalar_select 0, %s10, %s8
  $region1: #{sae_forward.1} parent=0
    #allocation2 [shape = 'u8[262144]{0}', space=vmem, size = 0x40000, scoped, tag = 'input window, operand 0']
    #allocation3 [shape = 's32[2]{0}', space=sflag, size = 0x8, scoped, tag = 'scoped memory for sae_forward.1']
    #allocation4 [shape = 's32[2]{0}', space=sflag, size = 0x8, scoped, tag = 'scoped memory for sae_forward.1']
    #allocation5 [shape = 'u8[1048576]{0}', space=vmem, size = 0x100000, scoped, tag = 'input window, operand 1']
    #allocation6 [shape = 's32[2]{0}', space=sflag, size = 0x8, scoped, tag = 'scoped memory for sae_forward.1']
    #allocation7 [shape = 'u8[1048576]{0}', space=vmem, size = 0x100000, scoped, tag = 'input window, operand 3']
    #allocation8 [shape = 'u8[262144]{0}', space=vmem, size = 0x40000, scoped, tag = 'output window, operand 0']
    #allocation9 [shape = 'u8[524288]{0}', space=vmem, size = 0x80000, scoped, tag = 'output window, operand 1']
    #allocation10 [shape = 's32[2]{0}', space=sflag, size = 0x8, scoped, tag = 'scoped memory for sae_forward.1']
    %12 = vsyncpa [#allocation3], 0
    %s13 = scalar_lea.sflag [#allocation3], 1
    %14 = vsyncpa %s13, 0
    %15 = vsyncpa [#allocation6], 0
    %s16 = scalar_lea.sflag [#allocation6], 1
    %17 = vsyncpa %s16, 0
    %18 = vsyncpa [#allocation4], 0
    %s19 = scalar_lea.sflag [#allocation4], 1
    %20 = vsyncpa %s19, 0
    %21 = vsyncpa [#allocation10], 0
    %s22 = scalar_lea.sflag [#allocation10], 1
    %23 = vsyncpa %s22, 0
    loop: start=0, step=1, limit=6
    $region2: #{sae_forward.1} parent=1 // loop_pre_header
      _
    $region3: #{sae_forward.1} parent=1 // loop_header
      %s25 = sphi 0, %s29
      %p26 = scmp.ge.s32.totalorder %s25, 6
      %s32 = sphi 0, %s44
      %s33 = sphi 0, %s40
      %s34 = sphi 0, %s32
      %s35 = sphi 0, %s33
      %s36 = sphi 0, %s34
      %s37 = sphi 0, %s35
      %s47 = sphi 0, %s49
      %s50 = sphi 0, %s47
      %s51 = sphi 0, %s50
      %s67 = sphi 0, %s51
      %s73 = sphi 0, %s75
      %s76 = sphi 0, %s73
      %s77 = sphi 0, %s76
      %s93 = sphi 0, %s77
      %s99 = sphi 0, %s101
      %s102 = sphi 0, %s99
      %s103 = sphi 0, %s102
      %s119 = sphi 0, %s103
      %s125 = sphi 0, %s127
      %s128 = sphi 0, %s125
      %s129 = sphi 0, %s128
      %s145 = sphi 0, %s129
      %s149 = sphi 0, %s149
      %s151 = sphi 0, %s149
      %s152 = sphi 0, %s151
      %s166 = sphi 0, %s152
      %s172 = sphi 0, %s174
      %s175 = sphi 0, %s172
      %s176 = sphi 0, %s175
      %s192 = sphi 0, %s176
      %s200 = sphi 0, %s202
      %s203 = sphi 0, %s200
      %s204 = sphi 0, %s203
      %s220 = sphi 0, %s204
    $region4: #{sae_forward.1} parent=1 // loop_header_branch
      %28 = sbr.rel (%p26) target = $region8
    $region5: #{sae_forward.1} parent=1 // loop_body
      %s30 = ssub.s32 %s25, 1
      %s31 = ssub.s32 %s25, 2
      %s38 = sadd.s32 1, %s33
      %p39 = scmp.ge.s32.totalorder %s38, 2
      %s40 = scalar_select %p39, 0, %s38
      %s41 = sadd.s32 1, %s32
      %s42 = scalar_select %p39, %s41, %s32
      %p43 = scmp.ge.s32.totalorder %s42, 2
      %s44 = scalar_select %p43, 0, %s42
      %s45 = ssub.s32 %s32, %s44
      %p46 = scmp.eq.s32.totalorder %s45, 0
      %s48 = sadd.s32 %s47, 1
      %s49 = scalar_select %p46, %s47, %s48
      %p52 = pneg %p46
      %p53 = scmp.eq.s32.totalorder %s25, 3
      %p54 = por %p52, %p53
      %p55 = scmp.ne.s32.totalorder %s47, %s50
      %p56 = scmp.eq.s32.totalorder %s25, 0
      %p57 = por %p55, %p56
      %p58 = scmp.ne.s32.totalorder %s47, %s50
      %p59 = scmp.eq.s32.totalorder %s30, 3
      %p60 = por %p58, %p59
      %p61 = scmp.ne.s32.totalorder %s50, %s51
      %p62 = scmp.eq.s32.totalorder %s30, 0
      %p63 = por %p61, %p62
      %p64 = scmp.ne.s32.totalorder %s50, %s51
      %p65 = scmp.eq.s32.totalorder %s31, 3
      %p66 = por %p64, %p65
      %p68 = scmp.ne.s32.totalorder %s51, %s67
      %p69 = scmp.eq.s32.totalorder %s31, 0
      %p70 = por %p68, %p69
      %s71 = ssub.s32 %s33, %s40
      %p72 = scmp.eq.s32.totalorder %s71, 0
      %s74 = sadd.s32 %s73, 1
      %s75 = scalar_select %p72, %s73, %s74
      %p78 = pneg %p72
      %p79 = scmp.eq.s32.totalorder %s25, 3
      %p80 = por %p78, %p79
      %p81 = scmp.ne.s32.totalorder %s73, %s76
      %p82 = scmp.eq.s32.totalorder %s25, 0
      %p83 = por %p81, %p82
      %p84 = scmp.ne.s32.totalorder %s73, %s76
      %p85 = scmp.eq.s32.totalorder %s30, 3
      %p86 = por %p84, %p85
      %p87 = scmp.ne.s32.totalorder %s76, %s77
      %p88 = scmp.eq.s32.totalorder %s30, 0
      %p89 = por %p87, %p88
      %p90 = scmp.ne.s32.totalorder %s76, %s77
      %p91 = scmp.eq.s32.totalorder %s31, 3
      %p92 = por %p90, %p91
      %p94 = scmp.ne.s32.totalorder %s77, %s93
      %p95 = scmp.eq.s32.totalorder %s31, 0
      %p96 = por %p94, %p95
      %s97 = ssub.s32 %s33, %s40
      %p98 = scmp.eq.s32.totalorder %s97, 0
      %s100 = sadd.s32 %s99, 1
      %s101 = scalar_select %p98, %s99, %s100
      %p104 = pneg %p98
      %p105 = scmp.eq.s32.totalorder %s25, 3
      %p106 = por %p104, %p105
      %p107 = scmp.ne.s32.totalorder %s99, %s102
      %p108 = scmp.eq.s32.totalorder %s25, 0
      %p109 = por %p107, %p108
      %p110 = scmp.ne.s32.totalorder %s99, %s102
      %p111 = scmp.eq.s32.totalorder %s30, 3
      %p112 = por %p110, %p111
      %p113 = scmp.ne.s32.totalorder %s102, %s103
      %p114 = scmp.eq.s32.totalorder %s30, 0
      %p115 = por %p113, %p114
      %p116 = scmp.ne.s32.totalorder %s102, %s103
      %p117 = scmp.eq.s32.totalorder %s31, 3
      %p118 = por %p116, %p117
      %p120 = scmp.ne.s32.totalorder %s103, %s119
      %p121 = scmp.eq.s32.totalorder %s31, 0
      %p122 = por %p120, %p121
      %s123 = ssub.s32 %s33, %s40
      %p124 = scmp.eq.s32.totalorder %s123, 0
      %s126 = sadd.s32 %s125, 1
      %s127 = scalar_select %p124, %s125, %s126
      %p130 = pneg %p124
      %p131 = scmp.eq.s32.totalorder %s25, 3
      %p132 = por %p130, %p131
      %p133 = scmp.ne.s32.totalorder %s125, %s128
      %p134 = scmp.eq.s32.totalorder %s25, 0
      %p135 = por %p133, %p134
      %p136 = scmp.ne.s32.totalorder %s125, %s128
      %p137 = scmp.eq.s32.totalorder %s30, 3
      %p138 = por %p136, %p137
      %p139 = scmp.ne.s32.totalorder %s128, %s129
      %p140 = scmp.eq.s32.totalorder %s30, 0
      %p141 = por %p139, %p140
      %p142 = scmp.ne.s32.totalorder %s128, %s129
      %p143 = scmp.eq.s32.totalorder %s31, 3
      %p144 = por %p142, %p143
      %p146 = scmp.ne.s32.totalorder %s129, %s145
      %p147 = scmp.eq.s32.totalorder %s31, 0
      %p148 = por %p146, %p147
      %s150 = sadd.s32 %s149, 1
      %p153 = scmp.eq.s32.totalorder %s25, 3
      %p154 = scmp.ne.s32.totalorder %s149, %s151
      %p155 = scmp.eq.s32.totalorder %s25, 0
      %p156 = por %p154, %p155
      %p157 = scmp.ne.s32.totalorder %s149, %s151
      %p158 = scmp.eq.s32.totalorder %s30, 3
      %p159 = por %p157, %p158
      %p160 = scmp.ne.s32.totalorder %s151, %s152
      %p161 = scmp.eq.s32.totalorder %s30, 0
      %p162 = por %p160, %p161
      %p163 = scmp.ne.s32.totalorder %s151, %s152
      %p164 = scmp.eq.s32.totalorder %s31, 3
      %p165 = por %p163, %p164
      %p167 = scmp.ne.s32.totalorder %s152, %s166
      %p168 = scmp.eq.s32.totalorder %s31, 0
      %p169 = por %p167, %p168
      %s170 = ssub.s32 %s32, %s44
      %p171 = scmp.eq.s32.totalorder %s170, 0
      %s173 = sadd.s32 %s172, 1
      %s174 = scalar_select %p171, %s172, %s173
      %p177 = pneg %p171
      %p178 = scmp.eq.s32.totalorder %s25, 3
      %p179 = por %p177, %p178
      %p180 = scmp.ne.s32.totalorder %s172, %s175
      %p181 = scmp.eq.s32.totalorder %s25, 0
      %p182 = por %p180, %p181
      %p183 = scmp.ne.s32.totalorder %s172, %s175
      %p184 = scmp.eq.s32.totalorder %s30, 3
      %p185 = por %p183, %p184
      %p186 = scmp.ne.s32.totalorder %s175, %s176
      %p187 = scmp.eq.s32.totalorder %s30, 0
      %p188 = por %p186, %p187
      %p189 = scmp.ne.s32.totalorder %s175, %s176
      %p190 = scmp.eq.s32.totalorder %s31, 3
      %p191 = por %p189, %p190
      %p193 = scmp.ne.s32.totalorder %s176, %s192
      %p194 = scmp.eq.s32.totalorder %s31, 0
      %p195 = por %p193, %p194
      %s196 = ssub.s32 %s32, %s44
      %s197 = ssub.s32 %s33, %s40
      %s198 = sor.u32 %s196, %s197
      %p199 = scmp.eq.s32.totalorder %s198, 0
      %s201 = sadd.s32 %s200, 1
      %s202 = scalar_select %p199, %s200, %s201
      %p205 = pneg %p199
      %p206 = scmp.eq.s32.totalorder %s25, 3
      %p207 = por %p205, %p206
      %p208 = scmp.ne.s32.totalorder %s200, %s203
      %p209 = scmp.eq.s32.totalorder %s25, 0
      %p210 = por %p208, %p209
      %p211 = scmp.ne.s32.totalorder %s200, %s203
      %p212 = scmp.eq.s32.totalorder %s30, 3
      %p213 = por %p211, %p212
      %p214 = scmp.ne.s32.totalorder %s203, %s204
      %p215 = scmp.eq.s32.totalorder %s30, 0
      %p216 = por %p214, %p215
      %p217 = scmp.ne.s32.totalorder %s203, %s204
      %p218 = scmp.eq.s32.totalorder %s31, 3
      %p219 = por %p217, %p218
      %p221 = scmp.ne.s32.totalorder %s204, %s220
      %p222 = scmp.eq.s32.totalorder %s31, 0
      %p223 = por %p221, %p222
      %p224 = scmp.le.s32.totalorder 1, %s25
      %p225 = scmp.lt.s32.totalorder %s25, 5
      %p226 = pnand %p224, %p225
      %p227 = pneg %p226
      // Predicated region
      $region9: #{sae_forward.1} parent=5 // pred_check
        _
      $region10: #{sae_forward.1} parent=5 // pred_check_branch
        %229 = sbr.rel (%p226) target = $region12
      $region11: #{sae_forward.1} parent=5 // pred_region
        %s230 = ssub.s32 %s25, 1
        // Predicated region
        $region13: #{sae_forward.1} parent=11 // pred_check
          %p231 = pneg %p162
        $region14: #{sae_forward.1} parent=11 // pred_check_branch
          %233 = sbr.rel (%p231) target = $region16
        $region15: #{sae_forward.1} parent=11 // pred_region
          _
        $region16: #{sae_forward.1} parent=11 // pred_fallthru
          _
      $region12: #{sae_forward.1} parent=5 // pred_fallthru
        _
      %p234 = scmp.lt.s32.totalorder %s25, 4
      // Predicated region
      $region17: #{sae_forward.1} parent=5 // pred_check
        %p235 = pneg %p234
      $region18: #{sae_forward.1} parent=5 // pred_check_branch
        %237 = sbr.rel (%p235) target = $region20
      $region19: #{sae_forward.1} parent=5 // pred_region
        // Predicated region
        $region21: #{sae_forward.1} parent=19 // pred_check
          %p238 = pneg %p57
        $region22: #{sae_forward.1} parent=19 // pred_check_branch
          %240 = sbr.rel (%p238) target = $region24
        $region23: #{sae_forward.1} parent=19 // pred_region
          %s241 = sand.u32 %s47, 1
          %s242 = scalar_lea.sflag [#allocation3], %s241
          %s243 = sand.u32 %s47, 1
          %s244 = smul.addr %s243, 256
          %s245 = scalar_lea.vmem [#allocation2], %s244
          %s246 = smul.u32 16, %s32
          %s248 = ssub.s32 4096, 4096
          %249 = vsyncadd %s242, %s248
          %s250 = smul.addr %s246, 2
          %s251 = smul.addr %s250, 128
          %s252 = scalar_lea.hbm %s0, %s251
          %s253 = sshll.u32 %s245, 4
          %s254 = int_to_ptr.vmem [resolvable:$true] %s253
          %259 = dma.hbm_to_vmem [thread:$0]  %s252, 4096, %s254, %s242, 256, 256, 16
        $region24: #{sae_forward.1} parent=19 // pred_fallthru
          _
        // Predicated region
        $region25: #{sae_forward.1} parent=19 // pred_check
          %p260 = pneg %p83
        $region26: #{sae_forward.1} parent=19 // pred_check_branch
          %262 = sbr.rel (%p260) target = $region28
        $region27: #{sae_forward.1} parent=19 // pred_region
          %s263 = sand.u32 %s25, 1
          %s264 = scalar_lea.sflag [#allocation6], %s263
          %s265 = sand.u32 %s73, 1
          %s266 = smul.addr %s265, 1024
          %s267 = scalar_lea.vmem [#allocation5], %s266
          %s268 = smul.u32 4, %s33
          %s270 = ssub.s32 16384, 16384
          %271 = vsyncadd %s264, %s270
          %s272 = smul.addr %s268, 128
          %s273 = scalar_lea.hbm %s1, %s272
          %s274 = sshll.u32 %s267, 4
          %s275 = int_to_ptr.vmem [resolvable:$true] %s274
          %280 = dma.hbm_to_vmem [thread:$0]  %s273, 16384, %s275, %s264, 1024, 512, 32
        $region28: #{sae_forward.1} parent=19 // pred_fallthru
          _
        // Predicated region
        $region29: #{sae_forward.1} parent=19 // pred_check
          %p281 = pneg %p109
        $region30: #{sae_forward.1} parent=19 // pred_check_branch
          %283 = sbr.rel (%p281) target = $region32
        $region31: #{sae_forward.1} parent=19 // pred_region
          %s284 = smul.u32 4, %s33
          %p285 = scmp.lt.s32.totalorder %s284, 7
          %s286 = scalar_select %p285, %s284, 7
          %s287 = scalar_lea.vmem %s2, %s286
          %s288 = smul.u32 4, %s33
        $region32: #{sae_forward.1} parent=19 // pred_fallthru
          _
        // Predicated region
        $region33: #{sae_forward.1} parent=19 // pred_check
          %p289 = pneg %p135
        $region34: #{sae_forward.1} parent=19 // pred_check_branch
          %291 = sbr.rel (%p289) target = $region36
        $region35: #{sae_forward.1} parent=19 // pred_region
          %s292 = sand.u32 %s25, 1
          %s293 = scalar_lea.sflag [#allocation6], %s292
          %s294 = sand.u32 %s125, 1
          %s295 = smul.addr %s294, 1024
          %s296 = scalar_lea.vmem [#allocation7], %s295
          %s297 = smul.u32 64, %s33
          %s299 = ssub.s32 16384, 16384
          %300 = vsyncadd %s293, %s299
          %s301 = smul.addr %s297, 2
          %s302 = smul.addr %s301, 128
          %s303 = scalar_lea.hbm %s3, %s302
          %s304 = sshll.u32 %s296, 4
          %s305 = int_to_ptr.vmem [resolvable:$true] %s304
          %310 = dma.hbm_to_vmem [thread:$0]  %s303, 16384, %s305, %s293, 256, 256, 16
        $region36: #{sae_forward.1} parent=19 // pred_fallthru
          _
      $region20: #{sae_forward.1} parent=5 // pred_fallthru
        _
      %p311 = scmp.le.s32.totalorder 1, %s25
      %p312 = scmp.lt.s32.totalorder %s25, 5
      %p313 = pnand %p311, %p312
      %p314 = pneg %p313
      // Predicated region
      $region37: #{sae_forward.1} parent=5 // pred_check
        _
      $region38: #{sae_forward.1} parent=5 // pred_check_branch
        %316 = sbr.rel (%p313) target = $region40
      $region39: #{sae_forward.1} parent=5 // pred_region
        %s317 = ssub.s32 %s25, 1
        %s318 = sand.u32 %s50, 1
        %s319 = scalar_lea.sflag [#allocation3], %s318
        %s320 = sand.u32 %s50, 1
        %s321 = smul.addr %s320, 256
        %s322 = scalar_lea.vmem [#allocation2], %s321
        // Predicated region
        $region41: #{sae_forward.1} parent=39 // pred_check
          %p323 = pneg %p63
        $region42: #{sae_forward.1} parent=39 // pred_check_branch
          %325 = sbr.rel (%p323) target = $region44
        $region43: #{sae_forward.1} parent=39 // pred_region
          %326 = dma.done %s319, 4096
        $region44: #{sae_forward.1} parent=39 // pred_fallthru
          _
        %s327 = sand.u32 %s30, 1
        %s328 = scalar_lea.sflag [#allocation6], %s327
        %s329 = sand.u32 %s76, 1
        %s330 = smul.addr %s329, 1024
        %s331 = scalar_lea.vmem [#allocation5], %s330
        // Predicated region
        $region45: #{sae_forward.1} parent=39 // pred_check
          %p332 = pneg %p89
        $region46: #{sae_forward.1} parent=39 // pred_check_branch
          %334 = sbr.rel (%p332) target = $region48
        $region47: #{sae_forward.1} parent=39 // pred_region
          %335 = dma.done %s328, 16384
        $region48: #{sae_forward.1} parent=39 // pred_fallthru
          _
        %s336 = sand.u32 %s30, 1
        %s337 = scalar_lea.sflag [#allocation6], %s336
        %s338 = sand.u32 %s128, 1
        %s339 = smul.addr %s338, 1024
        %s340 = scalar_lea.vmem [#allocation7], %s339
        // Predicated region
        $region49: #{sae_forward.1} parent=39 // pred_check
          %p341 = pneg %p141
        $region50: #{sae_forward.1} parent=39 // pred_check_branch
          %343 = sbr.rel (%p341) target = $region52
        $region51: #{sae_forward.1} parent=39 // pred_region
          %344 = dma.done %s337, 16384
        $region52: #{sae_forward.1} parent=39 // pred_fallthru
          _
        %s345 = sand.u32 %s50, 1
        %s346 = scalar_lea.sflag [#allocation3], %s345
        %s347 = sand.u32 %s50, 1
        %s348 = smul.addr %s347, 256
        %s349 = scalar_lea.vmem [#allocation2], %s348
        %p350 = pneg %p63
        %p351 = pneg %p60
        %s352 = sand.u32 %s30, 1
        %s353 = scalar_lea.sflag [#allocation6], %s352
        %s354 = sand.u32 %s76, 1
        %s355 = smul.addr %s354, 1024
        %s356 = scalar_lea.vmem [#allocation5], %s355
        %p357 = pneg %p89
        %p358 = pneg %p86
        %s359 = smul.u32 4, %s35
        %p360 = scmp.lt.s32.totalorder %s359, 7
        %s361 = scalar_select %p360, %s359, 7
        %s362 = scalar_lea.vmem %s2, %s361
        %p363 = pneg %p115
        %p364 = pneg %p112
        %s365 = sand.u32 %s30, 1
        %s366 = scalar_lea.sflag [#allocation6], %s365
        %s367 = sand.u32 %s128, 1
        %s368 = smul.addr %s367, 1024
        %s369 = scalar_lea.vmem [#allocation7], %s368
        %p370 = pneg %p141
        %p371 = pneg %p138
        %p372 = pneg %p162
        %p373 = pneg %p159
        %p374 = pneg %p188
        %p375 = pneg %p185
        %s376 = sand.u32 %s175, 1
        %s377 = scalar_lea.sflag [#allocation4], %s376
        %s378 = sand.u32 %s175, 1
        %s379 = smul.addr %s378, 256
        %s380 = scalar_lea.vmem [#allocation8], %s379
        %p381 = pneg %p216
        %p382 = pneg %p213
        %s383 = sand.u32 %s203, 1
        %s384 = scalar_lea.sflag [#allocation10], %s383
        %s385 = sand.u32 %s203, 1
        %s386 = smul.addr %s385, 512
        %s387 = scalar_lea.vmem [#allocation9], %s386
        %s388 = smul.u32 16, %s34
        %s389 = smul.u32 4, %s35
        %s390 = smul.u32 4, %s35
        %p391 = scmp.lt.s32.totalorder %s390, 7
        %s392 = scalar_select %p391, %s390, 7
        %s393 = scalar_lea.vmem %s2, %s392
        %s394 = smul.u32 4, %s35
        %s395 = smul.u32 64, %s35
        %s396 = smul.u32 16, %s34
        %s397 = smul.u32 16, %s34
        %s398 = smul.u32 4, %s35
        %v399 = vld [vmem:[%s322] sm:$0xff]
        %v400 = vld [vmem:[%s322 + $0x8] sm:$0xff]
        %v401 = vld [vmem:[%s322 + $0x10] sm:$0xff]
        %v402 = vld [vmem:[%s322 + $0x18] sm:$0xff]
        %v403 = vld [vmem:[%s322 + $0x20] sm:$0xff]
        %v404 = vld [vmem:[%s322 + $0x28] sm:$0xff]
        %v405 = vld [vmem:[%s322 + $0x30] sm:$0xff]
        %v406 = vld [vmem:[%s322 + $0x38] sm:$0xff]
        %v407 = vld [vmem:[%s322 + $0x40] sm:$0xff]
        %v408 = vld [vmem:[%s322 + $0x48] sm:$0xff]
        %v409 = vld [vmem:[%s322 + $0x50] sm:$0xff]
        %v410 = vld [vmem:[%s322 + $0x58] sm:$0xff]
        %v411 = vld [vmem:[%s322 + $0x60] sm:$0xff]
        %v412 = vld [vmem:[%s322 + $0x68] sm:$0xff]
        %v413 = vld [vmem:[%s322 + $0x70] sm:$0xff]
        %v414 = vld [vmem:[%s322 + $0x78] sm:$0xff]
        %v415 = vld [vmem:[%s322 + $0x80] sm:$0xff]
        %v416 = vld [vmem:[%s322 + $0x88] sm:$0xff]
        %v417 = vld [vmem:[%s322 + $0x90] sm:$0xff]
        %v418 = vld [vmem:[%s322 + $0x98] sm:$0xff]
        %v419 = vld [vmem:[%s322 + $0xa0] sm:$0xff]
        %v420 = vld [vmem:[%s322 + $0xa8] sm:$0xff]
        %v421 = vld [vmem:[%s322 + $0xb0] sm:$0xff]
        %v422 = vld [vmem:[%s322 + $0xb8] sm:$0xff]
        %v423 = vld [vmem:[%s322 + $0xc0] sm:$0xff]
        %v424 = vld [vmem:[%s322 + $0xc8] sm:$0xff]
        %v425 = vld [vmem:[%s322 + $0xd0] sm:$0xff]
        %v426 = vld [vmem:[%s322 + $0xd8] sm:$0xff]
        %v427 = vld [vmem:[%s322 + $0xe0] sm:$0xff]
        %v428 = vld [vmem:[%s322 + $0xe8] sm:$0xff]
        %v429 = vld [vmem:[%s322 + $0xf0] sm:$0xff]
        %v430 = vld [vmem:[%s322 + $0xf8] sm:$0xff]
        %v431 = vld [vmem:[%s331] sm:$0xff]
        %v432 = vld [vmem:[%s331 + $0x8] sm:$0xff]
        %v433 = vld [vmem:[%s331 + $0x10] sm:$0xff]
        %v434 = vld [vmem:[%s331 + $0x18] sm:$0xff]
        %v435 = vld [vmem:[%s331 + $0x20] sm:$0xff]
        %v436 = vld [vmem:[%s331 + $0x28] sm:$0xff]
        %v437 = vld [vmem:[%s331 + $0x30] sm:$0xff]
        %v438 = vld [vmem:[%s331 + $0x38] sm:$0xff]
        %v439 = vld [vmem:[%s331 + $0x40] sm:$0xff]
        %v440 = vld [vmem:[%s331 + $0x48] sm:$0xff]
        %v441 = vld [vmem:[%s331 + $0x50] sm:$0xff]
        %v442 = vld [vmem:[%s331 + $0x58] sm:$0xff]
        %v443 = vld [vmem:[%s331 + $0x60] sm:$0xff]
        %v444 = vld [vmem:[%s331 + $0x68] sm:$0xff]
        %v445 = vld [vmem:[%s331 + $0x70] sm:$0xff]
        %v446 = vld [vmem:[%s331 + $0x78] sm:$0xff]
        %v447 = vld [vmem:[%s331 + $0x80] sm:$0xff]
        %v448 = vld [vmem:[%s331 + $0x88] sm:$0xff]
        %v449 = vld [vmem:[%s331 + $0x90] sm:$0xff]
        %v450 = vld [vmem:[%s331 + $0x98] sm:$0xff]
        %v451 = vld [vmem:[%s331 + $0xa0] sm:$0xff]
        %v452 = vld [vmem:[%s331 + $0xa8] sm:$0xff]
        %v453 = vld [vmem:[%s331 + $0xb0] sm:$0xff]
        %v454 = vld [vmem:[%s331 + $0xb8] sm:$0xff]
        %v455 = vld [vmem:[%s331 + $0xc0] sm:$0xff]
        %v456 = vld [vmem:[%s331 + $0xc8] sm:$0xff]
        %v457 = vld [vmem:[%s331 + $0xd0] sm:$0xff]
        %v458 = vld [vmem:[%s331 + $0xd8] sm:$0xff]
        %v459 = vld [vmem:[%s331 + $0xe0] sm:$0xff]
        %v460 = vld [vmem:[%s331 + $0xe8] sm:$0xff]
        %v461 = vld [vmem:[%s331 + $0xf0] sm:$0xff]
        %v462 = vld [vmem:[%s331 + $0xf8] sm:$0xff]
        %v463 = vld [vmem:[%s331 + $0x100] sm:$0xff]
        %v464 = vld [vmem:[%s331 + $0x108] sm:$0xff]
        %v465 = vld [vmem:[%s331 + $0x110] sm:$0xff]
        %v466 = vld [vmem:[%s331 + $0x118] sm:$0xff]
        %v467 = vld [vmem:[%s331 + $0x120] sm:$0xff]
        %v468 = vld [vmem:[%s331 + $0x128] sm:$0xff]
        %v469 = vld [vmem:[%s331 + $0x130] sm:$0xff]
        %v470 = vld [vmem:[%s331 + $0x138] sm:$0xff]
        %v471 = vld [vmem:[%s331 + $0x140] sm:$0xff]
        %v472 = vld [vmem:[%s331 + $0x148] sm:$0xff]
        %v473 = vld [vmem:[%s331 + $0x150] sm:$0xff]
        %v474 = vld [vmem:[%s331 + $0x158] sm:$0xff]
        %v475 = vld [vmem:[%s331 + $0x160] sm:$0xff]
        %v476 = vld [vmem:[%s331 + $0x168] sm:$0xff]
        %v477 = vld [vmem:[%s331 + $0x170] sm:$0xff]
        %v478 = vld [vmem:[%s331 + $0x178] sm:$0xff]
        %v479 = vld [vmem:[%s331 + $0x180] sm:$0xff]
        %v480 = vld [vmem:[%s331 + $0x188] sm:$0xff]
        %v481 = vld [vmem:[%s331 + $0x190] sm:$0xff]
        %v482 = vld [vmem:[%s331 + $0x198] sm:$0xff]
        %v483 = vld [vmem:[%s331 + $0x1a0] sm:$0xff]
        %v484 = vld [vmem:[%s331 + $0x1a8] sm:$0xff]
        %v485 = vld [vmem:[%s331 + $0x1b0] sm:$0xff]
        %v486 = vld [vmem:[%s331 + $0x1b8] sm:$0xff]
        %v487 = vld [vmem:[%s331 + $0x1c0] sm:$0xff]
        %v488 = vld [vmem:[%s331 + $0x1c8] sm:$0xff]
        %v489 = vld [vmem:[%s331 + $0x1d0] sm:$0xff]
        %v490 = vld [vmem:[%s331 + $0x1d8] sm:$0xff]
        %v491 = vld [vmem:[%s331 + $0x1e0] sm:$0xff]
        %v492 = vld [vmem:[%s331 + $0x1e8] sm:$0xff]
        %v493 = vld [vmem:[%s331 + $0x1f0] sm:$0xff]
        %v494 = vld [vmem:[%s331 + $0x1f8] sm:$0xff]
        %v495 = vld [vmem:[%s331 + $0x200] sm:$0xff]
        %v496 = vld [vmem:[%s331 + $0x208] sm:$0xff]
        %v497 = vld [vmem:[%s331 + $0x210] sm:$0xff]
        %v498 = vld [vmem:[%s331 + $0x218] sm:$0xff]
        %v499 = vld [vmem:[%s331 + $0x220] sm:$0xff]
        %v500 = vld [vmem:[%s331 + $0x228] sm:$0xff]
        %v501 = vld [vmem:[%s331 + $0x230] sm:$0xff]
        %v502 = vld [vmem:[%s331 + $0x238] sm:$0xff]
        %v503 = vld [vmem:[%s331 + $0x240] sm:$0xff]
        %v504 = vld [vmem:[%s331 + $0x248] sm:$0xff]
        %v505 = vld [vmem:[%s331 + $0x250] sm:$0xff]
        %v506 = vld [vmem:[%s331 + $0x258] sm:$0xff]
        %v507 = vld [vmem:[%s331 + $0x260] sm:$0xff]
        %v508 = vld [vmem:[%s331 + $0x268] sm:$0xff]
        %v509 = vld [vmem:[%s331 + $0x270] sm:$0xff]
        %v510 = vld [vmem:[%s331 + $0x278] sm:$0xff]
        %v511 = vld [vmem:[%s331 + $0x280] sm:$0xff]
        %v512 = vld [vmem:[%s331 + $0x288] sm:$0xff]
        %v513 = vld [vmem:[%s331 + $0x290] sm:$0xff]
        %v514 = vld [vmem:[%s331 + $0x298] sm:$0xff]
        %v515 = vld [vmem:[%s331 + $0x2a0] sm:$0xff]
        %v516 = vld [vmem:[%s331 + $0x2a8] sm:$0xff]
        %v517 = vld [vmem:[%s331 + $0x2b0] sm:$0xff]
        %v518 = vld [vmem:[%s331 + $0x2b8] sm:$0xff]
        %v519 = vld [vmem:[%s331 + $0x2c0] sm:$0xff]
        %v520 = vld [vmem:[%s331 + $0x2c8] sm:$0xff]
        %v521 = vld [vmem:[%s331 + $0x2d0] sm:$0xff]
        %v522 = vld [vmem:[%s331 + $0x2d8] sm:$0xff]
        %v523 = vld [vmem:[%s331 + $0x2e0] sm:$0xff]
        %v524 = vld [vmem:[%s331 + $0x2e8] sm:$0xff]
        %v525 = vld [vmem:[%s331 + $0x2f0] sm:$0xff]
        %v526 = vld [vmem:[%s331 + $0x2f8] sm:$0xff]
        %v527 = vld [vmem:[%s331 + $0x300] sm:$0xff]
        %v528 = vld [vmem:[%s331 + $0x308] sm:$0xff]
        %v529 = vld [vmem:[%s331 + $0x310] sm:$0xff]
        %v530 = vld [vmem:[%s331 + $0x318] sm:$0xff]
        %v531 = vld [vmem:[%s331 + $0x320] sm:$0xff]
        %v532 = vld [vmem:[%s331 + $0x328] sm:$0xff]
        %v533 = vld [vmem:[%s331 + $0x330] sm:$0xff]
        %v534 = vld [vmem:[%s331 + $0x338] sm:$0xff]
        %v535 = vld [vmem:[%s331 + $0x340] sm:$0xff]
        %v536 = vld [vmem:[%s331 + $0x348] sm:$0xff]
        %v537 = vld [vmem:[%s331 + $0x350] sm:$0xff]
        %v538 = vld [vmem:[%s331 + $0x358] sm:$0xff]
        %v539 = vld [vmem:[%s331 + $0x360] sm:$0xff]
        %v540 = vld [vmem:[%s331 + $0x368] sm:$0xff]
        %v541 = vld [vmem:[%s331 + $0x370] sm:$0xff]
        %v542 = vld [vmem:[%s331 + $0x378] sm:$0xff]
        %v543 = vld [vmem:[%s331 + $0x380] sm:$0xff]
        %v544 = vld [vmem:[%s331 + $0x388] sm:$0xff]
        %v545 = vld [vmem:[%s331 + $0x390] sm:$0xff]
        %v546 = vld [vmem:[%s331 + $0x398] sm:$0xff]
        %v547 = vld [vmem:[%s331 + $0x3a0] sm:$0xff]
        %v548 = vld [vmem:[%s331 + $0x3a8] sm:$0xff]
        %v549 = vld [vmem:[%s331 + $0x3b0] sm:$0xff]
        %v550 = vld [vmem:[%s331 + $0x3b8] sm:$0xff]
        %v551 = vld [vmem:[%s331 + $0x3c0] sm:$0xff]
        %v552 = vld [vmem:[%s331 + $0x3c8] sm:$0xff]
        %v553 = vld [vmem:[%s331 + $0x3d0] sm:$0xff]
        %v554 = vld [vmem:[%s331 + $0x3d8] sm:$0xff]
        %v555 = vld [vmem:[%s331 + $0x3e0] sm:$0xff]
        %v556 = vld [vmem:[%s331 + $0x3e8] sm:$0xff]
        %v557 = vld [vmem:[%s331 + $0x3f0] sm:$0xff]
        %v558 = vld [vmem:[%s331 + $0x3f8] sm:$0xff]
        %v559 = vld [vmem:[%s393] sm:$0xf]
        %v561 = vlaneseq
        %v562 = vshrl.u32 %v561, 7
        %v563 = vsub.s32 0, %v562
        %v564 = vrot.slane %v559, %v563
        %v565 = vlaneseq
        %v566 = vshrl.u32 %v565, 7
        %v567 = vsub.s32 1, %v566
        %v568 = vrot.slane %v559, %v567
        %v569 = vlaneseq
        %v570 = vshrl.u32 %v569, 7
        %v571 = vsub.s32 2, %v570
        %v572 = vrot.slane %v559, %v571
        %v573 = vlaneseq
        %v574 = vshrl.u32 %v573, 7
        %v575 = vsub.s32 3, %v574
        %v576 = vrot.slane %v559, %v575
        %581 = vmatprep.subr.mxu0 %v432
        %582 = vmatpush1.msra.mxu0 %v431
        %583 = vmatprep.subr.mxu0 %v436
        %584 = vmatpush1.msra.mxu0 %v435
        %585 = vmatprep.subr.mxu0 %v440
        %586 = vmatpush1.msra.mxu0 %v439
        %587 = vmatprep.subr.mxu0 %v444
        %588 = vmatpush1.msra.mxu0 %v443
        %589 = vmatprep.subr.mxu0 %v448
        %590 = vmatpush1.msra.mxu0 %v447
        %591 = vmatprep.subr.mxu0 %v452
        %592 = vmatpush1.msra.mxu0 %v451
        %593 = vmatprep.subr.mxu0 %v456
        %594 = vmatpush1.msra.mxu0 %v455
        %595 = vmatprep.subr.mxu0 %v460
        %596 = vmatpush1.msra.mxu0 %v459
        %597 = vmatprep.subr.mxu0 %v464
        %598 = vmatpush1.msra.mxu0 %v463
        %599 = vmatprep.subr.mxu0 %v468
        %600 = vmatpush1.msra.mxu0 %v467
        %601 = vmatprep.subr.mxu0 %v472
        %602 = vmatpush1.msra.mxu0 %v471
        %603 = vmatprep.subr.mxu0 %v476
        %604 = vmatpush1.msra.mxu0 %v475
        %605 = vmatprep.subr.mxu0 %v480
        %606 = vmatpush1.msra.mxu0 %v479
        %607 = vmatprep.subr.mxu0 %v484
        %608 = vmatpush1.msra.mxu0 %v483
        %609 = vmatprep.subr.mxu0 %v488
        %610 = vmatpush1.msra.mxu0 %v487
        %611 = vmatprep.subr.mxu0 %v492
        %612 = vmatpush1.msra.mxu0 %v491
        %613 = vmatprep.subr.mxu0 %v496
        %614 = vmatpush1.msra.mxu0 %v495
        %615 = vmatprep.subr.mxu0 %v500
        %616 = vmatpush1.msra.mxu0 %v499
        %617 = vmatprep.subr.mxu0 %v504
        %618 = vmatpush1.msra.mxu0 %v503
        %619 = vmatprep.subr.mxu0 %v508
        %620 = vmatpush1.msra.mxu0 %v507
        %621 = vmatprep.subr.mxu0 %v512
        %622 = vmatpush1.msra.mxu0 %v511
        %623 = vmatprep.subr.mxu0 %v516
        %624 = vmatpush1.msra.mxu0 %v515
        %625 = vmatprep.subr.mxu0 %v520
        %626 = vmatpush1.msra.mxu0 %v519
        %627 = vmatprep.subr.mxu0 %v524
        %628 = vmatpush1.msra.mxu0 %v523
        %629 = vmatprep.subr.mxu0 %v528
        %630 = vmatpush1.msra.mxu0 %v527
        %631 = vmatprep.subr.mxu0 %v532
        %632 = vmatpush1.msra.mxu0 %v531
        %633 = vmatprep.subr.mxu0 %v536
        %634 = vmatpush1.msra.mxu0 %v535
        %635 = vmatprep.subr.mxu0 %v540
        %636 = vmatpush1.msra.mxu0 %v539
        %637 = vmatprep.subr.mxu0 %v544
        %638 = vmatpush1.msra.mxu0 %v543
        %639 = vmatprep.subr.mxu0 %v548
        %640 = vmatpush1.msra.mxu0 %v547
        %641 = vmatprep.subr.mxu0 %v552
        %642 = vmatpush1.msra.mxu0 %v551
        %643 = vmatprep.subr.mxu0 %v556
        %644 = vmatpush1.msra.mxu0 %v555
        %645 = vmatprep.mubr.f32.mxu0 %v400
        %646 = vmatmul.mubr.f32.gmra.mrb[0].mxu0 %v399
        %v647 = vpop.f32.mrb[0].mxu0
        %v648 = vadd.f32 %v564, %v647
        %v649 = vpop.f32.mrb[0].mxu0
        %v650 = vadd.f32 %v568, %v649
        %651 = vmatprep.mubr.f32.mxu0 %v402
        %652 = vmatmul.mubr.f32.gmra.mrb[0].mxu0 %v401
        %v653 = vpop.f32.mrb[0].mxu0
        %v654 = vadd.f32 %v564, %v653
        %v655 = vpop.f32.mrb[0].mxu0
        %v656 = vadd.f32 %v568, %v655
        %657 = vmatprep.mubr.f32.mxu0 %v404
        %658 = vmatmul.mubr.f32.gmra.mrb[0].mxu0 %v403
        %v659 = vpop.f32.mrb[0].mxu0
        %v660 = vadd.f32 %v564, %v659
        %v661 = vpop.f32.mrb[0].mxu0
        %v662 = vadd.f32 %v568, %v661
        %663 = vmatprep.mubr.f32.mxu0 %v406
        %664 = vmatmul.mubr.f32.gmra.mrb[0].mxu0 %v405
        %v665 = vpop.f32.mrb[0].mxu0
        %v666 = vadd.f32 %v564, %v665
        %v667 = vpop.f32.mrb[0].mxu0
        %v668 = vadd.f32 %v568, %v667
        %669 = vmatprep.mubr.f32.mxu0 %v408
        %670 = vmatmul.mubr.f32.gmra.mrb[0].mxu0 %v407
        %v671 = vpop.f32.mrb[0].mxu0
        %v672 = vadd.f32 %v564, %v671
        %v673 = vpop.f32.mrb[0].mxu0
        %v674 = vadd.f32 %v568, %v673
        %675 = vmatprep.mubr.f32.mxu0 %v410
        %676 = vmatmul.mubr.f32.gmra.mrb[0].mxu0 %v409
        %v677 = vpop.f32.mrb[0].mxu0
        %v678 = vadd.f32 %v564, %v677
        %v679 = vpop.f32.mrb[0].mxu0
        %v680 = vadd.f32 %v568, %v679
        %681 = vmatprep.mubr.f32.mxu0 %v412
        %682 = vmatmul.mubr.f32.gmra.mrb[0].mxu0 %v411
        %v683 = vpop.f32.mrb[0].mxu0
        %v684 = vadd.f32 %v564, %v683
        %v685 = vpop.f32.mrb[0].mxu0
        %v686 = vadd.f32 %v568, %v685
        %687 = vmatprep.mubr.f32.mxu0 %v414
        %688 = vmatmul.mubr.f32.gmra.mrb[0].mxu0 %v413
        %v689 = vpop.f32.mrb[0].mxu0
        %v690 = vadd.f32 %v564, %v689
        %v691 = vpop.f32.mrb[0].mxu0
        %v692 = vadd.f32 %v568, %v691
        %693 = vmatprep.mubr.f32.mxu0 %v416
        %694 = vmatmul.mubr.f32.gmra.mrb[0].mxu0 %v415
        %v695 = vpop.f32.mrb[0].mxu0
        %v696 = vadd.f32 %v564, %v695
        %v697 = vpop.f32.mrb[0].mxu0
        %v698 = vadd.f32 %v568, %v697
        %699 = vmatprep.mubr.f32.mxu0 %v418
        %700 = vmatmul.mubr.f32.gmra.mrb[0].mxu0 %v417
        %v701 = vpop.f32.mrb[0].mxu0
        %v702 = vadd.f32 %v564, %v701
        %v703 = vpop.f32.mrb[0].mxu0
        %v704 = vadd.f32 %v568, %v703
        %705 = vmatprep.mubr.f32.mxu0 %v420
        %706 = vmatmul.mubr.f32.gmra.mrb[0].mxu0 %v419
        %v707 = vpop.f32.mrb[0].mxu0
        %v708 = vadd.f32 %v564, %v707
        %v709 = vpop.f32.mrb[0].mxu0
        %v710 = vadd.f32 %v568, %v709
        %711 = vmatprep.mubr.f32.mxu0 %v422
        %712 = vmatmul.mubr.f32.gmra.mrb[0].mxu0 %v421
        %v713 = vpop.f32.mrb[0].mxu0
        %v714 = vadd.f32 %v564, %v713
        %v715 = vpop.f32.mrb[0].mxu0
        %v716 = vadd.f32 %v568, %v715
        %717 = vmatprep.mubr.f32.mxu0 %v424
        %718 = vmatmul.mubr.f32.gmra.mrb[0].mxu0 %v423
        %v719 = vpop.f32.mrb[0].mxu0
        %v720 = vadd.f32 %v564, %v719
        %v721 = vpop.f32.mrb[0].mxu0
        %v722 = vadd.f32 %v568, %v721
        %723 = vmatprep.mubr.f32.mxu0 %v426
        %724 = vmatmul.mubr.f32.gmra.mrb[0].mxu0 %v425
        %v725 = vpop.f32.mrb[0].mxu0
        %v726 = vadd.f32 %v564, %v725
        %v727 = vpop.f32.mrb[0].mxu0
        %v728 = vadd.f32 %v568, %v727
        %729 = vmatprep.mubr.f32.mxu0 %v428
        %730 = vmatmul.mubr.f32.gmra.mrb[0].mxu0 %v427
        %v731 = vpop.f32.mrb[0].mxu0
        %v732 = vadd.f32 %v564, %v731
        %v733 = vpop.f32.mrb[0].mxu0
        %v734 = vadd.f32 %v568, %v733
        %735 = vmatprep.mubr.f32.mxu0 %v430
        %736 = vmatmul.mubr.f32.gmra.mrb[0].mxu0 %v429
        %v737 = vpop.f32.mrb[0].mxu0
        %v738 = vadd.f32 %v564, %v737
        %v739 = vpop.f32.mrb[0].mxu0
        %v740 = vadd.f32 %v568, %v739
        %741 = vdwg.mxu0
        %742 = vmatprep.subr.mxu0 %v434
        %743 = vmatpush1.msra.mxu0 %v433
        %744 = vmatprep.subr.mxu0 %v438
        %745 = vmatpush1.msra.mxu0 %v437
        %746 = vmatprep.subr.mxu0 %v442
        %747 = vmatpush1.msra.mxu0 %v441
        %748 = vmatprep.subr.mxu0 %v446
        %749 = vmatpush1.msra.mxu0 %v445
        %750 = vmatprep.subr.mxu0 %v450
        %751 = vmatpush1.msra.mxu0 %v449
        %752 = vmatprep.subr.mxu0 %v454
        %753 = vmatpush1.msra.mxu0 %v453
        %754 = vmatprep.subr.mxu0 %v458
        %755 = vmatpush1.msra.mxu0 %v457
        %756 = vmatprep.subr.mxu0 %v462
        %757 = vmatpush1.msra.mxu0 %v461
        %758 = vmatprep.subr.mxu0 %v466
        %759 = vmatpush1.msra.mxu0 %v465
        %760 = vmatprep.subr.mxu0 %v470
        %761 = vmatpush1.msra.mxu0 %v469
        %762 = vmatprep.subr.mxu0 %v474
        %763 = vmatpush1.msra.mxu0 %v473
        %764 = vmatprep.subr.mxu0 %v478
        %765 = vmatpush1.msra.mxu0 %v477
        %766 = vmatprep.subr.mxu0 %v482
        %767 = vmatpush1.msra.mxu0 %v481
        %768 = vmatprep.subr.mxu0 %v486
        %769 = vmatpush1.msra.mxu0 %v485
        %770 = vmatprep.subr.mxu0 %v490
        %771 = vmatpush1.msra.mxu0 %v489
        %772 = vmatprep.subr.mxu0 %v494
        %773 = vmatpush1.msra.mxu0 %v493
        %774 = vmatprep.subr.mxu0 %v498
        %775 = vmatpush1.msra.mxu0 %v497
        %776 = vmatprep.subr.mxu0 %v502
        %777 = vmatpush1.msra.mxu0 %v501
        %778 = vmatprep.subr.mxu0 %v506
        %779 = vmatpush1.msra.mxu0 %v505
        %780 = vmatprep.subr.mxu0 %v510
        %781 = vmatpush1.msra.mxu0 %v509
        %782 = vmatprep.subr.mxu0 %v514
        %783 = vmatpush1.msra.mxu0 %v513
        %784 = vmatprep.subr.mxu0 %v518
        %785 = vmatpush1.msra.mxu0 %v517
        %786 = vmatprep.subr.mxu0 %v522
        %787 = vmatpush1.msra.mxu0 %v521
        %788 = vmatprep.subr.mxu0 %v526
        %789 = vmatpush1.msra.mxu0 %v525
        %790 = vmatprep.subr.mxu0 %v530
        %791 = vmatpush1.msra.mxu0 %v529
        %792 = vmatprep.subr.mxu0 %v534
        %793 = vmatpush1.msra.mxu0 %v533
        %794 = vmatprep.subr.mxu0 %v538
        %795 = vmatpush1.msra.mxu0 %v537
        %796 = vmatprep.subr.mxu0 %v542
        %797 = vmatpush1.msra.mxu0 %v541
        %798 = vmatprep.subr.mxu0 %v546
        %799 = vmatpush1.msra.mxu0 %v545
        %800 = vmatprep.subr.mxu0 %v550
        %801 = vmatpush1.msra.mxu0 %v549
        %802 = vmatprep.subr.mxu0 %v554
        %803 = vmatpush1.msra.mxu0 %v553
        %804 = vmatprep.subr.mxu0 %v558
        %805 = vmatpush1.msra.mxu0 %v557
        %806 = vmatprep.mubr.f32.mxu0 %v400
        %807 = vmatmul.mubr.f32.gmra.mrb[0].mxu0 %v399
        %v808 = vpop.f32.mrb[0].mxu0
        %v809 = vadd.f32 %v572, %v808
        %v810 = vpop.f32.mrb[0].mxu0
        %v811 = vadd.f32 %v576, %v810
        %812 = vmatprep.mubr.f32.mxu0 %v402
        %813 = vmatmul.mubr.f32.gmra.mrb[0].mxu0 %v401
        %v814 = vpop.f32.mrb[0].mxu0
        %v815 = vadd.f32 %v572, %v814
        %v816 = vpop.f32.mrb[0].mxu0
        %v817 = vadd.f32 %v576, %v816
        %818 = vmatprep.mubr.f32.mxu0 %v404
        %819 = vmatmul.mubr.f32.gmra.mrb[0].mxu0 %v403
        %v820 = vpop.f32.mrb[0].mxu0
        %v821 = vadd.f32 %v572, %v820
        %v822 = vpop.f32.mrb[0].mxu0
        %v823 = vadd.f32 %v576, %v822
        %824 = vmatprep.mubr.f32.mxu0 %v406
        %825 = vmatmul.mubr.f32.gmra.mrb[0].mxu0 %v405
        %v826 = vpop.f32.mrb[0].mxu0
        %v827 = vadd.f32 %v572, %v826
        %v828 = vpop.f32.mrb[0].mxu0
        %v829 = vadd.f32 %v576, %v828
        %830 = vmatprep.mubr.f32.mxu0 %v408
        %831 = vmatmul.mubr.f32.gmra.mrb[0].mxu0 %v407
        %v832 = vpop.f32.mrb[0].mxu0
        %v833 = vadd.f32 %v572, %v832
        %v834 = vpop.f32.mrb[0].mxu0
        %v835 = vadd.f32 %v576, %v834
        %836 = vmatprep.mubr.f32.mxu0 %v410
        %837 = vmatmul.mubr.f32.gmra.mrb[0].mxu0 %v409
        %v838 = vpop.f32.mrb[0].mxu0
        %v839 = vadd.f32 %v572, %v838
        %v840 = vpop.f32.mrb[0].mxu0
        %v841 = vadd.f32 %v576, %v840
        %842 = vmatprep.mubr.f32.mxu0 %v412
        %843 = vmatmul.mubr.f32.gmra.mrb[0].mxu0 %v411
        %v844 = vpop.f32.mrb[0].mxu0
        %v845 = vadd.f32 %v572, %v844
        %v846 = vpop.f32.mrb[0].mxu0
        %v847 = vadd.f32 %v576, %v846
        %848 = vmatprep.mubr.f32.mxu0 %v414
        %849 = vmatmul.mubr.f32.gmra.mrb[0].mxu0 %v413
        %v850 = vpop.f32.mrb[0].mxu0
        %v851 = vadd.f32 %v572, %v850
        %v852 = vpop.f32.mrb[0].mxu0
        %v853 = vadd.f32 %v576, %v852
        %854 = vmatprep.mubr.f32.mxu0 %v416
        %855 = vmatmul.mubr.f32.gmra.mrb[0].mxu0 %v415
        %v856 = vpop.f32.mrb[0].mxu0
        %v857 = vadd.f32 %v572, %v856
        %v858 = vpop.f32.mrb[0].mxu0
        %v859 = vadd.f32 %v576, %v858
        %860 = vmatprep.mubr.f32.mxu0 %v418
        %861 = vmatmul.mubr.f32.gmra.mrb[0].mxu0 %v417
        %v862 = vpop.f32.mrb[0].mxu0
        %v863 = vadd.f32 %v572, %v862
        %v864 = vpop.f32.mrb[0].mxu0
        %v865 = vadd.f32 %v576, %v864
        %866 = vmatprep.mubr.f32.mxu0 %v420
        %867 = vmatmul.mubr.f32.gmra.mrb[0].mxu0 %v419
        %v868 = vpop.f32.mrb[0].mxu0
        %v869 = vadd.f32 %v572, %v868
        %v870 = vpop.f32.mrb[0].mxu0
        %v871 = vadd.f32 %v576, %v870
        %872 = vmatprep.mubr.f32.mxu0 %v422
        %873 = vmatmul.mubr.f32.gmra.mrb[0].mxu0 %v421
        %v874 = vpop.f32.mrb[0].mxu0
        %v875 = vadd.f32 %v572, %v874
        %v876 = vpop.f32.mrb[0].mxu0
        %v877 = vadd.f32 %v576, %v876
        %878 = vmatprep.mubr.f32.mxu0 %v424
        %879 = vmatmul.mubr.f32.gmra.mrb[0].mxu0 %v423
        %v880 = vpop.f32.mrb[0].mxu0
        %v881 = vadd.f32 %v572, %v880
        %v882 = vpop.f32.mrb[0].mxu0
        %v883 = vadd.f32 %v576, %v882
        %884 = vmatprep.mubr.f32.mxu0 %v426
        %885 = vmatmul.mubr.f32.gmra.mrb[0].mxu0 %v425
        %v886 = vpop.f32.mrb[0].mxu0
        %v887 = vadd.f32 %v572, %v886
        %v888 = vpop.f32.mrb[0].mxu0
        %v889 = vadd.f32 %v576, %v888
        %890 = vmatprep.mubr.f32.mxu0 %v428
        %891 = vmatmul.mubr.f32.gmra.mrb[0].mxu0 %v427
        %v892 = vpop.f32.mrb[0].mxu0
        %v893 = vadd.f32 %v572, %v892
        %v894 = vpop.f32.mrb[0].mxu0
        %v895 = vadd.f32 %v576, %v894
        %896 = vmatprep.mubr.f32.mxu0 %v430
        %897 = vmatmul.mubr.f32.gmra.mrb[0].mxu0 %v429
        %v898 = vpop.f32.mrb[0].mxu0
        %v899 = vadd.f32 %v572, %v898
        %v900 = vpop.f32.mrb[0].mxu0
        %v901 = vadd.f32 %v576, %v900
        %902 = vdwg.mxu0
        %v903 = vmax.f32 %v648, 0.0
        %v904 = vmax.f32 %v650, 0.0
        %v905 = vmax.f32 %v809, 0.0
        %v906 = vmax.f32 %v811, 0.0
        %v907 = vmax.f32 %v654, 0.0
        %v908 = vmax.f32 %v656, 0.0
        %v909 = vmax.f32 %v815, 0.0
        %v910 = vmax.f32 %v817, 0.0
        %v911 = vmax.f32 %v660, 0.0
        %v912 = vmax.f32 %v662, 0.0
        %v913 = vmax.f32 %v821, 0.0
        %v914 = vmax.f32 %v823, 0.0
        %v915 = vmax.f32 %v666, 0.0
        %v916 = vmax.f32 %v668, 0.0
        %v917 = vmax.f32 %v827, 0.0
        %v918 = vmax.f32 %v829, 0.0
        %v919 = vmax.f32 %v672, 0.0
        %v920 = vmax.f32 %v674, 0.0
        %v921 = vmax.f32 %v833, 0.0
        %v922 = vmax.f32 %v835, 0.0
        %v923 = vmax.f32 %v678, 0.0
        %v924 = vmax.f32 %v680, 0.0
        %v925 = vmax.f32 %v839, 0.0
        %v926 = vmax.f32 %v841, 0.0
        %v927 = vmax.f32 %v684, 0.0
        %v928 = vmax.f32 %v686, 0.0
        %v929 = vmax.f32 %v845, 0.0
        %v930 = vmax.f32 %v847, 0.0
        %v931 = vmax.f32 %v690, 0.0
        %v932 = vmax.f32 %v692, 0.0
        %v933 = vmax.f32 %v851, 0.0
        %v934 = vmax.f32 %v853, 0.0
        %v935 = vmax.f32 %v696, 0.0
        %v936 = vmax.f32 %v698, 0.0
        %v937 = vmax.f32 %v857, 0.0
        %v938 = vmax.f32 %v859, 0.0
        %v939 = vmax.f32 %v702, 0.0
        %v940 = vmax.f32 %v704, 0.0
        %v941 = vmax.f32 %v863, 0.0
        %v942 = vmax.f32 %v865, 0.0
        %v943 = vmax.f32 %v708, 0.0
        %v944 = vmax.f32 %v710, 0.0
        %v945 = vmax.f32 %v869, 0.0
        %v946 = vmax.f32 %v871, 0.0
        %v947 = vmax.f32 %v714, 0.0
        %v948 = vmax.f32 %v716, 0.0
        %v949 = vmax.f32 %v875, 0.0
        %v950 = vmax.f32 %v877, 0.0
        %v951 = vmax.f32 %v720, 0.0
        %v952 = vmax.f32 %v722, 0.0
        %v953 = vmax.f32 %v881, 0.0
        %v954 = vmax.f32 %v883, 0.0
        %v955 = vmax.f32 %v726, 0.0
        %v956 = vmax.f32 %v728, 0.0
        %v957 = vmax.f32 %v887, 0.0
        %v958 = vmax.f32 %v889, 0.0
        %v959 = vmax.f32 %v732, 0.0
        %v960 = vmax.f32 %v734, 0.0
        %v961 = vmax.f32 %v893, 0.0
        %v962 = vmax.f32 %v895, 0.0
        %v963 = vmax.f32 %v738, 0.0
        %v964 = vmax.f32 %v740, 0.0
        %v965 = vmax.f32 %v899, 0.0
        %v966 = vmax.f32 %v901, 0.0
        %967 = vst [vmem:[%s387] sm:$0xff] %v903
        %968 = vst [vmem:[%s387 + $0x8] sm:$0xff] %v904
        %969 = vst [vmem:[%s387 + $0x10] sm:$0xff] %v905
        %970 = vst [vmem:[%s387 + $0x18] sm:$0xff] %v906
        %971 = vst [vmem:[%s387 + $0x20] sm:$0xff] %v907
        %972 = vst [vmem:[%s387 + $0x28] sm:$0xff] %v908
        %973 = vst [vmem:[%s387 + $0x30] sm:$0xff] %v909
        %974 = vst [vmem:[%s387 + $0x38] sm:$0xff] %v910
        %975 = vst [vmem:[%s387 + $0x40] sm:$0xff] %v911
        %976 = vst [vmem:[%s387 + $0x48] sm:$0xff] %v912
        %977 = vst [vmem:[%s387 + $0x50] sm:$0xff] %v913
        %978 = vst [vmem:[%s387 + $0x58] sm:$0xff] %v914
        %979 = vst [vmem:[%s387 + $0x60] sm:$0xff] %v915
        %980 = vst [vmem:[%s387 + $0x68] sm:$0xff] %v916
        %981 = vst [vmem:[%s387 + $0x70] sm:$0xff] %v917
        %982 = vst [vmem:[%s387 + $0x78] sm:$0xff] %v918
        %983 = vst [vmem:[%s387 + $0x80] sm:$0xff] %v919
        %984 = vst [vmem:[%s387 + $0x88] sm:$0xff] %v920
        %985 = vst [vmem:[%s387 + $0x90] sm:$0xff] %v921
        %986 = vst [vmem:[%s387 + $0x98] sm:$0xff] %v922
        %987 = vst [vmem:[%s387 + $0xa0] sm:$0xff] %v923
        %988 = vst [vmem:[%s387 + $0xa8] sm:$0xff] %v924
        %989 = vst [vmem:[%s387 + $0xb0] sm:$0xff] %v925
        %990 = vst [vmem:[%s387 + $0xb8] sm:$0xff] %v926
        %991 = vst [vmem:[%s387 + $0xc0] sm:$0xff] %v927
        %992 = vst [vmem:[%s387 + $0xc8] sm:$0xff] %v928
        %993 = vst [vmem:[%s387 + $0xd0] sm:$0xff] %v929
        %994 = vst [vmem:[%s387 + $0xd8] sm:$0xff] %v930
        %995 = vst [vmem:[%s387 + $0xe0] sm:$0xff] %v931
        %996 = vst [vmem:[%s387 + $0xe8] sm:$0xff] %v932
        %997 = vst [vmem:[%s387 + $0xf0] sm:$0xff] %v933
        %998 = vst [vmem:[%s387 + $0xf8] sm:$0xff] %v934
        %999 = vst [vmem:[%s387 + $0x100] sm:$0xff] %v935
        %1000 = vst [vmem:[%s387 + $0x108] sm:$0xff] %v936
        %1001 = vst [vmem:[%s387 + $0x110] sm:$0xff] %v937
        %1002 = vst [vmem:[%s387 + $0x118] sm:$0xff] %v938
        %1003 = vst [vmem:[%s387 + $0x120] sm:$0xff] %v939
        %1004 = vst [vmem:[%s387 + $0x128] sm:$0xff] %v940
        %1005 = vst [vmem:[%s387 + $0x130] sm:$0xff] %v941
        %1006 = vst [vmem:[%s387 + $0x138] sm:$0xff] %v942
        %1007 = vst [vmem:[%s387 + $0x140] sm:$0xff] %v943
        %1008 = vst [vmem:[%s387 + $0x148] sm:$0xff] %v944
        %1009 = vst [vmem:[%s387 + $0x150] sm:$0xff] %v945
        %1010 = vst [vmem:[%s387 + $0x158] sm:$0xff] %v946
        %1011 = vst [vmem:[%s387 + $0x160] sm:$0xff] %v947
        %1012 = vst [vmem:[%s387 + $0x168] sm:$0xff] %v948
        %1013 = vst [vmem:[%s387 + $0x170] sm:$0xff] %v949
        %1014 = vst [vmem:[%s387 + $0x178] sm:$0xff] %v950
        %1015 = vst [vmem:[%s387 + $0x180] sm:$0xff] %v951
        %1016 = vst [vmem:[%s387 + $0x188] sm:$0xff] %v952
        %1017 = vst [vmem:[%s387 + $0x190] sm:$0xff] %v953
        %1018 = vst [vmem:[%s387 + $0x198] sm:$0xff] %v954
        %1019 = vst [vmem:[%s387 + $0x1a0] sm:$0xff] %v955
        %1020 = vst [vmem:[%s387 + $0x1a8] sm:$0xff] %v956
        %1021 = vst [vmem:[%s387 + $0x1b0] sm:$0xff] %v957
        %1022 = vst [vmem:[%s387 + $0x1b8] sm:$0xff] %v958
        %1023 = vst [vmem:[%s387 + $0x1c0] sm:$0xff] %v959
        %1024 = vst [vmem:[%s387 + $0x1c8] sm:$0xff] %v960
        %1025 = vst [vmem:[%s387 + $0x1d0] sm:$0xff] %v961
        %1026 = vst [vmem:[%s387 + $0x1d8] sm:$0xff] %v962
        %1027 = vst [vmem:[%s387 + $0x1e0] sm:$0xff] %v963
        %1028 = vst [vmem:[%s387 + $0x1e8] sm:$0xff] %v964
        %1029 = vst [vmem:[%s387 + $0x1f0] sm:$0xff] %v965
        %1030 = vst [vmem:[%s387 + $0x1f8] sm:$0xff] %v966
        %v1031 = vld [vmem:[%s340] sm:$0xff]
        %v1032 = vld [vmem:[%s340 + $0x8] sm:$0xff]
        %v1033 = vld [vmem:[%s340 + $0x10] sm:$0xff]
        %v1034 = vld [vmem:[%s340 + $0x18] sm:$0xff]
        %v1035 = vld [vmem:[%s340 + $0x20] sm:$0xff]
        %v1036 = vld [vmem:[%s340 + $0x28] sm:$0xff]
        %v1037 = vld [vmem:[%s340 + $0x30] sm:$0xff]
        %v1038 = vld [vmem:[%s340 + $0x38] sm:$0xff]
        %v1039 = vld [vmem:[%s340 + $0x40] sm:$0xff]
        %v1040 = vld [vmem:[%s340 + $0x48] sm:$0xff]
        %v1041 = vld [vmem:[%s340 + $0x50] sm:$0xff]
        %v1042 = vld [vmem:[%s340 + $0x58] sm:$0xff]
        %v1043 = vld [vmem:[%s340 + $0x60] sm:$0xff]
        %v1044 = vld [vmem:[%s340 + $0x68] sm:$0xff]
        %v1045 = vld [vmem:[%s340 + $0x70] sm:$0xff]
        %v1046 = vld [vmem:[%s340 + $0x78] sm:$0xff]
        %v1047 = vld [vmem:[%s340 + $0x80] sm:$0xff]
        %v1048 = vld [vmem:[%s340 + $0x88] sm:$0xff]
        %v1049 = vld [vmem:[%s340 + $0x90] sm:$0xff]
        %v1050 = vld [vmem:[%s340 + $0x98] sm:$0xff]
        %v1051 = vld [vmem:[%s340 + $0xa0] sm:$0xff]
        %v1052 = vld [vmem:[%s340 + $0xa8] sm:$0xff]
        %v1053 = vld [vmem:[%s340 + $0xb0] sm:$0xff]
        %v1054 = vld [vmem:[%s340 + $0xb8] sm:$0xff]
        %v1055 = vld [vmem:[%s340 + $0xc0] sm:$0xff]
        %v1056 = vld [vmem:[%s340 + $0xc8] sm:$0xff]
        %v1057 = vld [vmem:[%s340 + $0xd0] sm:$0xff]
        %v1058 = vld [vmem:[%s340 + $0xd8] sm:$0xff]
        %v1059 = vld [vmem:[%s340 + $0xe0] sm:$0xff]
        %v1060 = vld [vmem:[%s340 + $0xe8] sm:$0xff]
        %v1061 = vld [vmem:[%s340 + $0xf0] sm:$0xff]
        %v1062 = vld [vmem:[%s340 + $0xf8] sm:$0xff]
        %v1063 = vld [vmem:[%s340 + $0x100] sm:$0xff]
        %v1064 = vld [vmem:[%s340 + $0x108] sm:$0xff]
        %v1065 = vld [vmem:[%s340 + $0x110] sm:$0xff]
        %v1066 = vld [vmem:[%s340 + $0x118] sm:$0xff]
        %v1067 = vld [vmem:[%s340 + $0x120] sm:$0xff]
        %v1068 = vld [vmem:[%s340 + $0x128] sm:$0xff]
        %v1069 = vld [vmem:[%s340 + $0x130] sm:$0xff]
        %v1070 = vld [vmem:[%s340 + $0x138] sm:$0xff]
        %v1071 = vld [vmem:[%s340 + $0x140] sm:$0xff]
        %v1072 = vld [vmem:[%s340 + $0x148] sm:$0xff]
        %v1073 = vld [vmem:[%s340 + $0x150] sm:$0xff]
        %v1074 = vld [vmem:[%s340 + $0x158] sm:$0xff]
        %v1075 = vld [vmem:[%s340 + $0x160] sm:$0xff]
        %v1076 = vld [vmem:[%s340 + $0x168] sm:$0xff]
        %v1077 = vld [vmem:[%s340 + $0x170] sm:$0xff]
        %v1078 = vld [vmem:[%s340 + $0x178] sm:$0xff]
        %v1079 = vld [vmem:[%s340 + $0x180] sm:$0xff]
        %v1080 = vld [vmem:[%s340 + $0x188] sm:$0xff]
        %v1081 = vld [vmem:[%s340 + $0x190] sm:$0xff]
        %v1082 = vld [vmem:[%s340 + $0x198] sm:$0xff]
        %v1083 = vld [vmem:[%s340 + $0x1a0] sm:$0xff]
        %v1084 = vld [vmem:[%s340 + $0x1a8] sm:$0xff]
        %v1085 = vld [vmem:[%s340 + $0x1b0] sm:$0xff]
        %v1086 = vld [vmem:[%s340 + $0x1b8] sm:$0xff]
        %v1087 = vld [vmem:[%s340 + $0x1c0] sm:$0xff]
        %v1088 = vld [vmem:[%s340 + $0x1c8] sm:$0xff]
        %v1089 = vld [vmem:[%s340 + $0x1d0] sm:$0xff]
        %v1090 = vld [vmem:[%s340 + $0x1d8] sm:$0xff]
        %v1091 = vld [vmem:[%s340 + $0x1e0] sm:$0xff]
        %v1092 = vld [vmem:[%s340 + $0x1e8] sm:$0xff]
        %v1093 = vld [vmem:[%s340 + $0x1f0] sm:$0xff]
        %v1094 = vld [vmem:[%s340 + $0x1f8] sm:$0xff]
        %v1095 = vld [vmem:[%s340 + $0x200] sm:$0xff]
        %v1096 = vld [vmem:[%s340 + $0x208] sm:$0xff]
        %v1097 = vld [vmem:[%s340 + $0x210] sm:$0xff]
        %v1098 = vld [vmem:[%s340 + $0x218] sm:$0xff]
        %v1099 = vld [vmem:[%s340 + $0x220] sm:$0xff]
        %v1100 = vld [vmem:[%s340 + $0x228] sm:$0xff]
        %v1101 = vld [vmem:[%s340 + $0x230] sm:$0xff]
        %v1102 = vld [vmem:[%s340 + $0x238] sm:$0xff]
        %v1103 = vld [vmem:[%s340 + $0x240] sm:$0xff]
        %v1104 = vld [vmem:[%s340 + $0x248] sm:$0xff]
        %v1105 = vld [vmem:[%s340 + $0x250] sm:$0xff]
        %v1106 = vld [vmem:[%s340 + $0x258] sm:$0xff]
        %v1107 = vld [vmem:[%s340 + $0x260] sm:$0xff]
        %v1108 = vld [vmem:[%s340 + $0x268] sm:$0xff]
        %v1109 = vld [vmem:[%s340 + $0x270] sm:$0xff]
        %v1110 = vld [vmem:[%s340 + $0x278] sm:$0xff]
        %v1111 = vld [vmem:[%s340 + $0x280] sm:$0xff]
        %v1112 = vld [vmem:[%s340 + $0x288] sm:$0xff]
        %v1113 = vld [vmem:[%s340 + $0x290] sm:$0xff]
        %v1114 = vld [vmem:[%s340 + $0x298] sm:$0xff]
        %v1115 = vld [vmem:[%s340 + $0x2a0] sm:$0xff]
        %v1116 = vld [vmem:[%s340 + $0x2a8] sm:$0xff]
        %v1117 = vld [vmem:[%s340 + $0x2b0] sm:$0xff]
        %v1118 = vld [vmem:[%s340 + $0x2b8] sm:$0xff]
        %v1119 = vld [vmem:[%s340 + $0x2c0] sm:$0xff]
        %v1120 = vld [vmem:[%s340 + $0x2c8] sm:$0xff]
        %v1121 = vld [vmem:[%s340 + $0x2d0] sm:$0xff]
        %v1122 = vld [vmem:[%s340 + $0x2d8] sm:$0xff]
        %v1123 = vld [vmem:[%s340 + $0x2e0] sm:$0xff]
        %v1124 = vld [vmem:[%s340 + $0x2e8] sm:$0xff]
        %v1125 = vld [vmem:[%s340 + $0x2f0] sm:$0xff]
        %v1126 = vld [vmem:[%s340 + $0x2f8] sm:$0xff]
        %v1127 = vld [vmem:[%s340 + $0x300] sm:$0xff]
        %v1128 = vld [vmem:[%s340 + $0x308] sm:$0xff]
        %v1129 = vld [vmem:[%s340 + $0x310] sm:$0xff]
        %v1130 = vld [vmem:[%s340 + $0x318] sm:$0xff]
        %v1131 = vld [vmem:[%s340 + $0x320] sm:$0xff]
        %v1132 = vld [vmem:[%s340 + $0x328] sm:$0xff]
        %v1133 = vld [vmem:[%s340 + $0x330] sm:$0xff]
        %v1134 = vld [vmem:[%s340 + $0x338] sm:$0xff]
        %v1135 = vld [vmem:[%s340 + $0x340] sm:$0xff]
        %v1136 = vld [vmem:[%s340 + $0x348] sm:$0xff]
        %v1137 = vld [vmem:[%s340 + $0x350] sm:$0xff]
        %v1138 = vld [vmem:[%s340 + $0x358] sm:$0xff]
        %v1139 = vld [vmem:[%s340 + $0x360] sm:$0xff]
        %v1140 = vld [vmem:[%s340 + $0x368] sm:$0xff]
        %v1141 = vld [vmem:[%s340 + $0x370] sm:$0xff]
        %v1142 = vld [vmem:[%s340 + $0x378] sm:$0xff]
        %v1143 = vld [vmem:[%s340 + $0x380] sm:$0xff]
        %v1144 = vld [vmem:[%s340 + $0x388] sm:$0xff]
        %v1145 = vld [vmem:[%s340 + $0x390] sm:$0xff]
        %v1146 = vld [vmem:[%s340 + $0x398] sm:$0xff]
        %v1147 = vld [vmem:[%s340 + $0x3a0] sm:$0xff]
        %v1148 = vld [vmem:[%s340 + $0x3a8] sm:$0xff]
        %v1149 = vld [vmem:[%s340 + $0x3b0] sm:$0xff]
        %v1150 = vld [vmem:[%s340 + $0x3b8] sm:$0xff]
        %v1151 = vld [vmem:[%s340 + $0x3c0] sm:$0xff]
        %v1152 = vld [vmem:[%s340 + $0x3c8] sm:$0xff]
        %v1153 = vld [vmem:[%s340 + $0x3d0] sm:$0xff]
        %v1154 = vld [vmem:[%s340 + $0x3d8] sm:$0xff]
        %v1155 = vld [vmem:[%s340 + $0x3e0] sm:$0xff]
        %v1156 = vld [vmem:[%s340 + $0x3e8] sm:$0xff]
        %v1157 = vld [vmem:[%s340 + $0x3f0] sm:$0xff]
        %v1158 = vld [vmem:[%s340 + $0x3f8] sm:$0xff]
        %1159 = vmatprep.subr.mxu0 %v1032
        %1160 = vmatpush1.msra.mxu0 %v1031
        %1161 = vmatprep.subr.mxu0 %v1034
        %1162 = vmatpush1.msra.mxu0 %v1033
        %1163 = vmatprep.subr.mxu0 %v1036
        %1164 = vmatpush1.msra.mxu0 %v1035
        %1165 = vmatprep.subr.mxu0 %v1038
        %1166 = vmatpush1.msra.mxu0 %v1037
        %1167 = vmatprep.subr.mxu0 %v1040
        %1168 = vmatpush1.msra.mxu0 %v1039
        %1169 = vmatprep.subr.mxu0 %v1042
        %1170 = vmatpush1.msra.mxu0 %v1041
        %1171 = vmatprep.subr.mxu0 %v1044
        %1172 = vmatpush1.msra.mxu0 %v1043
        %1173 = vmatprep.subr.mxu0 %v1046
        %1174 = vmatpush1.msra.mxu0 %v1045
        %1175 = vmatprep.subr.mxu0 %v1048
        %1176 = vmatpush1.msra.mxu0 %v1047
        %1177 = vmatprep.subr.mxu0 %v1050
        %1178 = vmatpush1.msra.mxu0 %v1049
        %1179 = vmatprep.subr.mxu0 %v1052
        %1180 = vmatpush1.msra.mxu0 %v1051
        %1181 = vmatprep.subr.mxu0 %v1054
        %1182 = vmatpush1.msra.mxu0 %v1053
        %1183 = vmatprep.subr.mxu0 %v1056
        %1184 = vmatpush1.msra.mxu0 %v1055
        %1185 = vmatprep.subr.mxu0 %v1058
        %1186 = vmatpush1.msra.mxu0 %v1057
        %1187 = vmatprep.subr.mxu0 %v1060
        %1188 = vmatpush1.msra.mxu0 %v1059
        %1189 = vmatprep.subr.mxu0 %v1062
        %1190 = vmatpush1.msra.mxu0 %v1061
        %1191 = vmatprep.subr.mxu0 %v1064
        %1192 = vmatpush1.msra.mxu0 %v1063
        %1193 = vmatprep.subr.mxu0 %v1066
        %1194 = vmatpush1.msra.mxu0 %v1065
        %1195 = vmatprep.subr.mxu0 %v1068
        %1196 = vmatpush1.msra.mxu0 %v1067
        %1197 = vmatprep.subr.mxu0 %v1070
        %1198 = vmatpush1.msra.mxu0 %v1069
        %1199 = vmatprep.subr.mxu0 %v1072
        %1200 = vmatpush1.msra.mxu0 %v1071
        %1201 = vmatprep.subr.mxu0 %v1074
        %1202 = vmatpush1.msra.mxu0 %v1073
        %1203 = vmatprep.subr.mxu0 %v1076
        %1204 = vmatpush1.msra.mxu0 %v1075
        %1205 = vmatprep.subr.mxu0 %v1078
        %1206 = vmatpush1.msra.mxu0 %v1077
        %1207 = vmatprep.subr.mxu0 %v1080
        %1208 = vmatpush1.msra.mxu0 %v1079
        %1209 = vmatprep.subr.mxu0 %v1082
        %1210 = vmatpush1.msra.mxu0 %v1081
        %1211 = vmatprep.subr.mxu0 %v1084
        %1212 = vmatpush1.msra.mxu0 %v1083
        %1213 = vmatprep.subr.mxu0 %v1086
        %1214 = vmatpush1.msra.mxu0 %v1085
        %1215 = vmatprep.subr.mxu0 %v1088
        %1216 = vmatpush1.msra.mxu0 %v1087
        %1217 = vmatprep.subr.mxu0 %v1090
        %1218 = vmatpush1.msra.mxu0 %v1089
        %1219 = vmatprep.subr.mxu0 %v1092
        %1220 = vmatpush1.msra.mxu0 %v1091
        %1221 = vmatprep.subr.mxu0 %v1094
        %1222 = vmatpush1.msra.mxu0 %v1093
        %1223 = vmatprep.mubr.f32.mxu0 %v904
        %1224 = vmatmul.mubr.f32.gmra.mrb[0].mxu0 %v903
        %v1225 = vpop.f32.mrb[0].mxu0
        %v1226 = vadd.f32 0.0, %v1225
        %v1227 = vpop.f32.mrb[0].mxu0
        %v1228 = vadd.f32 0.0, %v1227
        %1229 = vmatprep.mubr.f32.mxu0 %v908
        %1230 = vmatmul.mubr.f32.gmra.mrb[0].mxu0 %v907
        %v1231 = vpop.f32.mrb[0].mxu0
        %v1232 = vadd.f32 0.0, %v1231
        %v1233 = vpop.f32.mrb[0].mxu0
        %v1234 = vadd.f32 0.0, %v1233
        %1235 = vmatprep.mubr.f32.mxu0 %v912
        %1236 = vmatmul.mubr.f32.gmra.mrb[0].mxu0 %v911
        %v1237 = vpop.f32.mrb[0].mxu0
        %v1238 = vadd.f32 0.0, %v1237
        %v1239 = vpop.f32.mrb[0].mxu0
        %v1240 = vadd.f32 0.0, %v1239
        %1241 = vmatprep.mubr.f32.mxu0 %v916
        %1242 = vmatmul.mubr.f32.gmra.mrb[0].mxu0 %v915
        %v1243 = vpop.f32.mrb[0].mxu0
        %v1244 = vadd.f32 0.0, %v1243
        %v1245 = vpop.f32.mrb[0].mxu0
        %v1246 = vadd.f32 0.0, %v1245
        %1247 = vmatprep.mubr.f32.mxu0 %v920
        %1248 = vmatmul.mubr.f32.gmra.mrb[0].mxu0 %v919
        %v1249 = vpop.f32.mrb[0].mxu0
        %v1250 = vadd.f32 0.0, %v1249
        %v1251 = vpop.f32.mrb[0].mxu0
        %v1252 = vadd.f32 0.0, %v1251
        %1253 = vmatprep.mubr.f32.mxu0 %v924
        %1254 = vmatmul.mubr.f32.gmra.mrb[0].mxu0 %v923
        %v1255 = vpop.f32.mrb[0].mxu0
        %v1256 = vadd.f32 0.0, %v1255
        %v1257 = vpop.f32.mrb[0].mxu0
        %v1258 = vadd.f32 0.0, %v1257
        %1259 = vmatprep.mubr.f32.mxu0 %v928
        %1260 = vmatmul.mubr.f32.gmra.mrb[0].mxu0 %v927
        %v1261 = vpop.f32.mrb[0].mxu0
        %v1262 = vadd.f32 0.0, %v1261
        %v1263 = vpop.f32.mrb[0].mxu0
        %v1264 = vadd.f32 0.0, %v1263
        %1265 = vmatprep.mubr.f32.mxu0 %v932
        %1266 = vmatmul.mubr.f32.gmra.mrb[0].mxu0 %v931
        %v1267 = vpop.f32.mrb[0].mxu0
        %v1268 = vadd.f32 0.0, %v1267
        %v1269 = vpop.f32.mrb[0].mxu0
        %v1270 = vadd.f32 0.0, %v1269
        %1271 = vmatprep.mubr.f32.mxu0 %v936
        %1272 = vmatmul.mubr.f32.gmra.mrb[0].mxu0 %v935
        %v1273 = vpop.f32.mrb[0].mxu0
        %v1274 = vadd.f32 0.0, %v1273
        %v1275 = vpop.f32.mrb[0].mxu0
        %v1276 = vadd.f32 0.0, %v1275
        %1277 = vmatprep.mubr.f32.mxu0 %v940
        %1278 = vmatmul.mubr.f32.gmra.mrb[0].mxu0 %v939
        %v1279 = vpop.f32.mrb[0].mxu0
        %v1280 = vadd.f32 0.0, %v1279
        %v1281 = vpop.f32.mrb[0].mxu0
        %v1282 = vadd.f32 0.0, %v1281
        %1283 = vmatprep.mubr.f32.mxu0 %v944
        %1284 = vmatmul.mubr.f32.gmra.mrb[0].mxu0 %v943
        %v1285 = vpop.f32.mrb[0].mxu0
        %v1286 = vadd.f32 0.0, %v1285
        %v1287 = vpop.f32.mrb[0].mxu0
        %v1288 = vadd.f32 0.0, %v1287
        %1289 = vmatprep.mubr.f32.mxu0 %v948
        %1290 = vmatmul.mubr.f32.gmra.mrb[0].mxu0 %v947
        %v1291 = vpop.f32.mrb[0].mxu0
        %v1292 = vadd.f32 0.0, %v1291
        %v1293 = vpop.f32.mrb[0].mxu0
        %v1294 = vadd.f32 0.0, %v1293
        %1295 = vmatprep.mubr.f32.mxu0 %v952
        %1296 = vmatmul.mubr.f32.gmra.mrb[0].mxu0 %v951
        %v1297 = vpop.f32.mrb[0].mxu0
        %v1298 = vadd.f32 0.0, %v1297
        %v1299 = vpop.f32.mrb[0].mxu0
        %v1300 = vadd.f32 0.0, %v1299
        %1301 = vmatprep.mubr.f32.mxu0 %v956
        %1302 = vmatmul.mubr.f32.gmra.mrb[0].mxu0 %v955
        %v1303 = vpop.f32.mrb[0].mxu0
        %v1304 = vadd.f32 0.0, %v1303
        %v1305 = vpop.f32.mrb[0].mxu0
        %v1306 = vadd.f32 0.0, %v1305
        %1307 = vmatprep.mubr.f32.mxu0 %v960
        %1308 = vmatmul.mubr.f32.gmra.mrb[0].mxu0 %v959
        %v1309 = vpop.f32.mrb[0].mxu0
        %v1310 = vadd.f32 0.0, %v1309
        %v1311 = vpop.f32.mrb[0].mxu0
        %v1312 = vadd.f32 0.0, %v1311
        %1313 = vmatprep.mubr.f32.mxu0 %v964
        %1314 = vmatmul.mubr.f32.gmra.mrb[0].mxu0 %v963
        %v1315 = vpop.f32.mrb[0].mxu0
        %v1316 = vadd.f32 0.0, %v1315
        %v1317 = vpop.f32.mrb[0].mxu0
        %v1318 = vadd.f32 0.0, %v1317
        %1319 = vdwg.mxu0
        %1320 = vmatprep.subr.mxu0 %v1096
        %1321 = vmatpush1.msra.mxu0 %v1095
        %1322 = vmatprep.subr.mxu0 %v1098
        %1323 = vmatpush1.msra.mxu0 %v1097
        %1324 = vmatprep.subr.mxu0 %v1100
        %1325 = vmatpush1.msra.mxu0 %v1099
        %1326 = vmatprep.subr.mxu0 %v1102
        %1327 = vmatpush1.msra.mxu0 %v1101
        %1328 = vmatprep.subr.mxu0 %v1104
        %1329 = vmatpush1.msra.mxu0 %v1103
        %1330 = vmatprep.subr.mxu0 %v1106
        %1331 = vmatpush1.msra.mxu0 %v1105
        %1332 = vmatprep.subr.mxu0 %v1108
        %1333 = vmatpush1.msra.mxu0 %v1107
        %1334 = vmatprep.subr.mxu0 %v1110
        %1335 = vmatpush1.msra.mxu0 %v1109
        %1336 = vmatprep.subr.mxu0 %v1112
        %1337 = vmatpush1.msra.mxu0 %v1111
        %1338 = vmatprep.subr.mxu0 %v1114
        %1339 = vmatpush1.msra.mxu0 %v1113
        %1340 = vmatprep.subr.mxu0 %v1116
        %1341 = vmatpush1.msra.mxu0 %v1115
        %1342 = vmatprep.subr.mxu0 %v1118
        %1343 = vmatpush1.msra.mxu0 %v1117
        %1344 = vmatprep.subr.mxu0 %v1120
        %1345 = vmatpush1.msra.mxu0 %v1119
        %1346 = vmatprep.subr.mxu0 %v1122
        %1347 = vmatpush1.msra.mxu0 %v1121
        %1348 = vmatprep.subr.mxu0 %v1124
        %1349 = vmatpush1.msra.mxu0 %v1123
        %1350 = vmatprep.subr.mxu0 %v1126
        %1351 = vmatpush1.msra.mxu0 %v1125
        %1352 = vmatprep.subr.mxu0 %v1128
        %1353 = vmatpush1.msra.mxu0 %v1127
        %1354 = vmatprep.subr.mxu0 %v1130
        %1355 = vmatpush1.msra.mxu0 %v1129
        %1356 = vmatprep.subr.mxu0 %v1132
        %1357 = vmatpush1.msra.mxu0 %v1131
        %1358 = vmatprep.subr.mxu0 %v1134
        %1359 = vmatpush1.msra.mxu0 %v1133
        %1360 = vmatprep.subr.mxu0 %v1136
        %1361 = vmatpush1.msra.mxu0 %v1135
        %1362 = vmatprep.subr.mxu0 %v1138
        %1363 = vmatpush1.msra.mxu0 %v1137
        %1364 = vmatprep.subr.mxu0 %v1140
        %1365 = vmatpush1.msra.mxu0 %v1139
        %1366 = vmatprep.subr.mxu0 %v1142
        %1367 = vmatpush1.msra.mxu0 %v1141
        %1368 = vmatprep.subr.mxu0 %v1144
        %1369 = vmatpush1.msra.mxu0 %v1143
        %1370 = vmatprep.subr.mxu0 %v1146
        %1371 = vmatpush1.msra.mxu0 %v1145
        %1372 = vmatprep.subr.mxu0 %v1148
        %1373 = vmatpush1.msra.mxu0 %v1147
        %1374 = vmatprep.subr.mxu0 %v1150
        %1375 = vmatpush1.msra.mxu0 %v1149
        %1376 = vmatprep.subr.mxu0 %v1152
        %1377 = vmatpush1.msra.mxu0 %v1151
        %1378 = vmatprep.subr.mxu0 %v1154
        %1379 = vmatpush1.msra.mxu0 %v1153
        %1380 = vmatprep.subr.mxu0 %v1156
        %1381 = vmatpush1.msra.mxu0 %v1155
        %1382 = vmatprep.subr.mxu0 %v1158
        %1383 = vmatpush1.msra.mxu0 %v1157
        %1384 = vmatprep.mubr.f32.mxu0 %v906
        %1385 = vmatmul.mubr.f32.gmra.mrb[0].mxu0 %v905
        %v1386 = vpop.f32.mrb[0].mxu0
        %v1387 = vadd.f32 %v1226, %v1386
        %v1388 = vpop.f32.mrb[0].mxu0
        %v1389 = vadd.f32 %v1228, %v1388
        %1390 = vmatprep.mubr.f32.mxu0 %v910
        %1391 = vmatmul.mubr.f32.gmra.mrb[0].mxu0 %v909
        %v1392 = vpop.f32.mrb[0].mxu0
        %v1393 = vadd.f32 %v1232, %v1392
        %v1394 = vpop.f32.mrb[0].mxu0
        %v1395 = vadd.f32 %v1234, %v1394
        %1396 = vmatprep.mubr.f32.mxu0 %v914
        %1397 = vmatmul.mubr.f32.gmra.mrb[0].mxu0 %v913
        %v1398 = vpop.f32.mrb[0].mxu0
        %v1399 = vadd.f32 %v1238, %v1398
        %v1400 = vpop.f32.mrb[0].mxu0
        %v1401 = vadd.f32 %v1240, %v1400
        %1402 = vmatprep.mubr.f32.mxu0 %v918
        %1403 = vmatmul.mubr.f32.gmra.mrb[0].mxu0 %v917
        %v1404 = vpop.f32.mrb[0].mxu0
        %v1405 = vadd.f32 %v1244, %v1404
        %v1406 = vpop.f32.mrb[0].mxu0
        %v1407 = vadd.f32 %v1246, %v1406
        %1408 = vmatprep.mubr.f32.mxu0 %v922
        %1409 = vmatmul.mubr.f32.gmra.mrb[0].mxu0 %v921
        %v1410 = vpop.f32.mrb[0].mxu0
        %v1411 = vadd.f32 %v1250, %v1410
        %v1412 = vpop.f32.mrb[0].mxu0
        %v1413 = vadd.f32 %v1252, %v1412
        %1414 = vmatprep.mubr.f32.mxu0 %v926
        %1415 = vmatmul.mubr.f32.gmra.mrb[0].mxu0 %v925
        %v1416 = vpop.f32.mrb[0].mxu0
        %v1417 = vadd.f32 %v1256, %v1416
        %v1418 = vpop.f32.mrb[0].mxu0
        %v1419 = vadd.f32 %v1258, %v1418
        %1420 = vmatprep.mubr.f32.mxu0 %v930
        %1421 = vmatmul.mubr.f32.gmra.mrb[0].mxu0 %v929
        %v1422 = vpop.f32.mrb[0].mxu0
        %v1423 = vadd.f32 %v1262, %v1422
        %v1424 = vpop.f32.mrb[0].mxu0
        %v1425 = vadd.f32 %v1264, %v1424
        %1426 = vmatprep.mubr.f32.mxu0 %v934
        %1427 = vmatmul.mubr.f32.gmra.mrb[0].mxu0 %v933
        %v1428 = vpop.f32.mrb[0].mxu0
        %v1429 = vadd.f32 %v1268, %v1428
        %v1430 = vpop.f32.mrb[0].mxu0
        %v1431 = vadd.f32 %v1270, %v1430
        %1432 = vmatprep.mubr.f32.mxu0 %v938
        %1433 = vmatmul.mubr.f32.gmra.mrb[0].mxu0 %v937
        %v1434 = vpop.f32.mrb[0].mxu0
        %v1435 = vadd.f32 %v1274, %v1434
        %v1436 = vpop.f32.mrb[0].mxu0
        %v1437 = vadd.f32 %v1276, %v1436
        %1438 = vmatprep.mubr.f32.mxu0 %v942
        %1439 = vmatmul.mubr.f32.gmra.mrb[0].mxu0 %v941
        %v1440 = vpop.f32.mrb[0].mxu0
        %v1441 = vadd.f32 %v1280, %v1440
        %v1442 = vpop.f32.mrb[0].mxu0
        %v1443 = vadd.f32 %v1282, %v1442
        %1444 = vmatprep.mubr.f32.mxu0 %v946
        %1445 = vmatmul.mubr.f32.gmra.mrb[0].mxu0 %v945
        %v1446 = vpop.f32.mrb[0].mxu0
        %v1447 = vadd.f32 %v1286, %v1446
        %v1448 = vpop.f32.mrb[0].mxu0
        %v1449 = vadd.f32 %v1288, %v1448
        %1450 = vmatprep.mubr.f32.mxu0 %v950
        %1451 = vmatmul.mubr.f32.gmra.mrb[0].mxu0 %v949
        %v1452 = vpop.f32.mrb[0].mxu0
        %v1453 = vadd.f32 %v1292, %v1452
        %v1454 = vpop.f32.mrb[0].mxu0
        %v1455 = vadd.f32 %v1294, %v1454
        %1456 = vmatprep.mubr.f32.mxu0 %v954
        %1457 = vmatmul.mubr.f32.gmra.mrb[0].mxu0 %v953
        %v1458 = vpop.f32.mrb[0].mxu0
        %v1459 = vadd.f32 %v1298, %v1458
        %v1460 = vpop.f32.mrb[0].mxu0
        %v1461 = vadd.f32 %v1300, %v1460
        %1462 = vmatprep.mubr.f32.mxu0 %v958
        %1463 = vmatmul.mubr.f32.gmra.mrb[0].mxu0 %v957
        %v1464 = vpop.f32.mrb[0].mxu0
        %v1465 = vadd.f32 %v1304, %v1464
        %v1466 = vpop.f32.mrb[0].mxu0
        %v1467 = vadd.f32 %v1306, %v1466
        %1468 = vmatprep.mubr.f32.mxu0 %v962
        %1469 = vmatmul.mubr.f32.gmra.mrb[0].mxu0 %v961
        %v1470 = vpop.f32.mrb[0].mxu0
        %v1471 = vadd.f32 %v1310, %v1470
        %v1472 = vpop.f32.mrb[0].mxu0
        %v1473 = vadd.f32 %v1312, %v1472
        %1474 = vmatprep.mubr.f32.mxu0 %v966
        %1475 = vmatmul.mubr.f32.gmra.mrb[0].mxu0 %v965
        %v1476 = vpop.f32.mrb[0].mxu0
        %v1477 = vadd.f32 %v1316, %v1476
        %v1478 = vpop.f32.mrb[0].mxu0
        %v1479 = vadd.f32 %v1318, %v1478
        %1480 = vdwg.mxu0
        %p1481 = scmp.eq.s32.totalorder %s35, 0
        // Predicated region
        $region53: #{sae_forward.1} parent=39 // pred_check
          %p1482 = pneg %p1481
        $region54: #{sae_forward.1} parent=39 // pred_check_branch
          %1484 = sbr.rel (%p1482) target = $region56
        $region55: #{sae_forward.1} parent=39 // pred_region
          %1485 = vst [vmem:[%s380] sm:$0xff] %v1387
          %1486 = vst [vmem:[%s380 + $0x8] sm:$0xff] %v1389
          %1487 = vst [vmem:[%s380 + $0x10] sm:$0xff] %v1393
          %1488 = vst [vmem:[%s380 + $0x18] sm:$0xff] %v1395
          %1489 = vst [vmem:[%s380 + $0x20] sm:$0xff] %v1399
          %1490 = vst [vmem:[%s380 + $0x28] sm:$0xff] %v1401
          %1491 = vst [vmem:[%s380 + $0x30] sm:$0xff] %v1405
          %1492 = vst [vmem:[%s380 + $0x38] sm:$0xff] %v1407
          %1493 = vst [vmem:[%s380 + $0x40] sm:$0xff] %v1411
          %1494 = vst [vmem:[%s380 + $0x48] sm:$0xff] %v1413
          %1495 = vst [vmem:[%s380 + $0x50] sm:$0xff] %v1417
          %1496 = vst [vmem:[%s380 + $0x58] sm:$0xff] %v1419
          %1497 = vst [vmem:[%s380 + $0x60] sm:$0xff] %v1423
          %1498 = vst [vmem:[%s380 + $0x68] sm:$0xff] %v1425
          %1499 = vst [vmem:[%s380 + $0x70] sm:$0xff] %v1429
          %1500 = vst [vmem:[%s380 + $0x78] sm:$0xff] %v1431
          %1501 = vst [vmem:[%s380 + $0x80] sm:$0xff] %v1435
          %1502 = vst [vmem:[%s380 + $0x88] sm:$0xff] %v1437
          %1503 = vst [vmem:[%s380 + $0x90] sm:$0xff] %v1441
          %1504 = vst [vmem:[%s380 + $0x98] sm:$0xff] %v1443
          %1505 = vst [vmem:[%s380 + $0xa0] sm:$0xff] %v1447
          %1506 = vst [vmem:[%s380 + $0xa8] sm:$0xff] %v1449
          %1507 = vst [vmem:[%s380 + $0xb0] sm:$0xff] %v1453
          %1508 = vst [vmem:[%s380 + $0xb8] sm:$0xff] %v1455
          %1509 = vst [vmem:[%s380 + $0xc0] sm:$0xff] %v1459
          %1510 = vst [vmem:[%s380 + $0xc8] sm:$0xff] %v1461
          %1511 = vst [vmem:[%s380 + $0xd0] sm:$0xff] %v1465
          %1512 = vst [vmem:[%s380 + $0xd8] sm:$0xff] %v1467
          %1513 = vst [vmem:[%s380 + $0xe0] sm:$0xff] %v1471
          %1514 = vst [vmem:[%s380 + $0xe8] sm:$0xff] %v1473
          %1515 = vst [vmem:[%s380 + $0xf0] sm:$0xff] %v1477
          %1516 = vst [vmem:[%s380 + $0xf8] sm:$0xff] %v1479
        $region56: #{sae_forward.1} parent=39 // pred_fallthru
          _
        %p1517 = scmp.gt.s32.totalorder %s35, 0
        // Predicated region
        $region57: #{sae_forward.1} parent=39 // pred_check
          %p1518 = pneg %p1517
        $region58: #{sae_forward.1} parent=39 // pred_check_branch
          %1520 = sbr.rel (%p1518) target = $region60
        $region59: #{sae_forward.1} parent=39 // pred_region
          %v1521 = vld [vmem:[%s380] sm:$0xff]
          %v1522 = vld [vmem:[%s380 + $0x8] sm:$0xff]
          %v1523 = vld [vmem:[%s380 + $0x10] sm:$0xff]
          %v1524 = vld [vmem:[%s380 + $0x18] sm:$0xff]
          %v1525 = vld [vmem:[%s380 + $0x20] sm:$0xff]
          %v1526 = vld [vmem:[%s380 + $0x28] sm:$0xff]
          %v1527 = vld [vmem:[%s380 + $0x30] sm:$0xff]
          %v1528 = vld [vmem:[%s380 + $0x38] sm:$0xff]
          %v1529 = vld [vmem:[%s380 + $0x40] sm:$0xff]
          %v1530 = vld [vmem:[%s380 + $0x48] sm:$0xff]
          %v1531 = vld [vmem:[%s380 + $0x50] sm:$0xff]
          %v1532 = vld [vmem:[%s380 + $0x58] sm:$0xff]
          %v1533 = vld [vmem:[%s380 + $0x60] sm:$0xff]
          %v1534 = vld [vmem:[%s380 + $0x68] sm:$0xff]
          %v1535 = vld [vmem:[%s380 + $0x70] sm:$0xff]
          %v1536 = vld [vmem:[%s380 + $0x78] sm:$0xff]
          %v1537 = vld [vmem:[%s380 + $0x80] sm:$0xff]
          %v1538 = vld [vmem:[%s380 + $0x88] sm:$0xff]
          %v1539 = vld [vmem:[%s380 + $0x90] sm:$0xff]
          %v1540 = vld [vmem:[%s380 + $0x98] sm:$0xff]
          %v1541 = vld [vmem:[%s380 + $0xa0] sm:$0xff]
          %v1542 = vld [vmem:[%s380 + $0xa8] sm:$0xff]
          %v1543 = vld [vmem:[%s380 + $0xb0] sm:$0xff]
          %v1544 = vld [vmem:[%s380 + $0xb8] sm:$0xff]
          %v1545 = vld [vmem:[%s380 + $0xc0] sm:$0xff]
          %v1546 = vld [vmem:[%s380 + $0xc8] sm:$0xff]
          %v1547 = vld [vmem:[%s380 + $0xd0] sm:$0xff]
          %v1548 = vld [vmem:[%s380 + $0xd8] sm:$0xff]
          %v1549 = vld [vmem:[%s380 + $0xe0] sm:$0xff]
          %v1550 = vld [vmem:[%s380 + $0xe8] sm:$0xff]
          %v1551 = vld [vmem:[%s380 + $0xf0] sm:$0xff]
          %v1552 = vld [vmem:[%s380 + $0xf8] sm:$0xff]
          %v1553 = vadd.f32 %v1521, %v1387
          %v1554 = vadd.f32 %v1522, %v1389
          %v1555 = vadd.f32 %v1523, %v1393
          %v1556 = vadd.f32 %v1524, %v1395
          %v1557 = vadd.f32 %v1525, %v1399
          %v1558 = vadd.f32 %v1526, %v1401
          %v1559 = vadd.f32 %v1527, %v1405
          %v1560 = vadd.f32 %v1528, %v1407
          %v1561 = vadd.f32 %v1529, %v1411
          %v1562 = vadd.f32 %v1530, %v1413
          %v1563 = vadd.f32 %v1531, %v1417
          %v1564 = vadd.f32 %v1532, %v1419
          %v1565 = vadd.f32 %v1533, %v1423
          %v1566 = vadd.f32 %v1534, %v1425
          %v1567 = vadd.f32 %v1535, %v1429
          %v1568 = vadd.f32 %v1536, %v1431
          %v1569 = vadd.f32 %v1537, %v1435
          %v1570 = vadd.f32 %v1538, %v1437
          %v1571 = vadd.f32 %v1539, %v1441
          %v1572 = vadd.f32 %v1540, %v1443
          %v1573 = vadd.f32 %v1541, %v1447
          %v1574 = vadd.f32 %v1542, %v1449
          %v1575 = vadd.f32 %v1543, %v1453
          %v1576 = vadd.f32 %v1544, %v1455
          %v1577 = vadd.f32 %v1545, %v1459
          %v1578 = vadd.f32 %v1546, %v1461
          %v1579 = vadd.f32 %v1547, %v1465
          %v1580 = vadd.f32 %v1548, %v1467
          %v1581 = vadd.f32 %v1549, %v1471
          %v1582 = vadd.f32 %v1550, %v1473
          %v1583 = vadd.f32 %v1551, %v1477
          %v1584 = vadd.f32 %v1552, %v1479
          %1585 = vst [vmem:[%s380] sm:$0xff] %v1553
          %1586 = vst [vmem:[%s380 + $0x8] sm:$0xff] %v1554
          %1587 = vst [vmem:[%s380 + $0x10] sm:$0xff] %v1555
          %1588 = vst [vmem:[%s380 + $0x18] sm:$0xff] %v1556
          %1589 = vst [vmem:[%s380 + $0x20] sm:$0xff] %v1557
          %1590 = vst [vmem:[%s380 + $0x28] sm:$0xff] %v1558
          %1591 = vst [vmem:[%s380 + $0x30] sm:$0xff] %v1559
          %1592 = vst [vmem:[%s380 + $0x38] sm:$0xff] %v1560
          %1593 = vst [vmem:[%s380 + $0x40] sm:$0xff] %v1561
          %1594 = vst [vmem:[%s380 + $0x48] sm:$0xff] %v1562
          %1595 = vst [vmem:[%s380 + $0x50] sm:$0xff] %v1563
          %1596 = vst [vmem:[%s380 + $0x58] sm:$0xff] %v1564
          %1597 = vst [vmem:[%s380 + $0x60] sm:$0xff] %v1565
          %1598 = vst [vmem:[%s380 + $0x68] sm:$0xff] %v1566
          %1599 = vst [vmem:[%s380 + $0x70] sm:$0xff] %v1567
          %1600 = vst [vmem:[%s380 + $0x78] sm:$0xff] %v1568
          %1601 = vst [vmem:[%s380 + $0x80] sm:$0xff] %v1569
          %1602 = vst [vmem:[%s380 + $0x88] sm:$0xff] %v1570
          %1603 = vst [vmem:[%s380 + $0x90] sm:$0xff] %v1571
          %1604 = vst [vmem:[%s380 + $0x98] sm:$0xff] %v1572
          %1605 = vst [vmem:[%s380 + $0xa0] sm:$0xff] %v1573
          %1606 = vst [vmem:[%s380 + $0xa8] sm:$0xff] %v1574
          %1607 = vst [vmem:[%s380 + $0xb0] sm:$0xff] %v1575
          %1608 = vst [vmem:[%s380 + $0xb8] sm:$0xff] %v1576
          %1609 = vst [vmem:[%s380 + $0xc0] sm:$0xff] %v1577
          %1610 = vst [vmem:[%s380 + $0xc8] sm:$0xff] %v1578
          %1611 = vst [vmem:[%s380 + $0xd0] sm:$0xff] %v1579
          %1612 = vst [vmem:[%s380 + $0xd8] sm:$0xff] %v1580
          %1613 = vst [vmem:[%s380 + $0xe0] sm:$0xff] %v1581
          %1614 = vst [vmem:[%s380 + $0xe8] sm:$0xff] %v1582
          %1615 = vst [vmem:[%s380 + $0xf0] sm:$0xff] %v1583
          %1616 = vst [vmem:[%s380 + $0xf8] sm:$0xff] %v1584
        $region60: #{sae_forward.1} parent=39 // pred_fallthru
          _
        %p1617 = scmp.eq.s32.totalorder %s35, 1
        // Predicated region
        $region61: #{sae_forward.1} parent=39 // pred_check
          %p1618 = pneg %p1617
        $region62: #{sae_forward.1} parent=39 // pred_check_branch
          %1620 = sbr.rel (%p1618) target = $region64
        $region63: #{sae_forward.1} parent=39 // pred_region
          %v1621 = vld [vmem:[%s380] sm:$0xff]
          %v1622 = vld [vmem:[%s380 + $0x8] sm:$0xff]
          %v1623 = vld [vmem:[%s380 + $0x10] sm:$0xff]
          %v1624 = vld [vmem:[%s380 + $0x18] sm:$0xff]
          %v1625 = vld [vmem:[%s380 + $0x20] sm:$0xff]
          %v1626 = vld [vmem:[%s380 + $0x28] sm:$0xff]
          %v1627 = vld [vmem:[%s380 + $0x30] sm:$0xff]
          %v1628 = vld [vmem:[%s380 + $0x38] sm:$0xff]
          %v1629 = vld [vmem:[%s380 + $0x40] sm:$0xff]
          %v1630 = vld [vmem:[%s380 + $0x48] sm:$0xff]
          %v1631 = vld [vmem:[%s380 + $0x50] sm:$0xff]
          %v1632 = vld [vmem:[%s380 + $0x58] sm:$0xff]
          %v1633 = vld [vmem:[%s380 + $0x60] sm:$0xff]
          %v1634 = vld [vmem:[%s380 + $0x68] sm:$0xff]
          %v1635 = vld [vmem:[%s380 + $0x70] sm:$0xff]
          %v1636 = vld [vmem:[%s380 + $0x78] sm:$0xff]
          %v1637 = vld [vmem:[%s380 + $0x80] sm:$0xff]
          %v1638 = vld [vmem:[%s380 + $0x88] sm:$0xff]
          %v1639 = vld [vmem:[%s380 + $0x90] sm:$0xff]
          %v1640 = vld [vmem:[%s380 + $0x98] sm:$0xff]
          %v1641 = vld [vmem:[%s380 + $0xa0] sm:$0xff]
          %v1642 = vld [vmem:[%s380 + $0xa8] sm:$0xff]
          %v1643 = vld [vmem:[%s380 + $0xb0] sm:$0xff]
          %v1644 = vld [vmem:[%s380 + $0xb8] sm:$0xff]
          %v1645 = vld [vmem:[%s380 + $0xc0] sm:$0xff]
          %v1646 = vld [vmem:[%s380 + $0xc8] sm:$0xff]
          %v1647 = vld [vmem:[%s380 + $0xd0] sm:$0xff]
          %v1648 = vld [vmem:[%s380 + $0xd8] sm:$0xff]
          %v1649 = vld [vmem:[%s380 + $0xe0] sm:$0xff]
          %v1650 = vld [vmem:[%s380 + $0xe8] sm:$0xff]
          %v1651 = vld [vmem:[%s380 + $0xf0] sm:$0xff]
          %v1652 = vld [vmem:[%s380 + $0xf8] sm:$0xff]
          %v1653 = vld [vmem:[%s4] sm:$0x3]
          %v1655 = vlaneseq
          %v1656 = vshrl.u32 %v1655, 7
          %v1657 = vsub.s32 0, %v1656
          %v1658 = vrot.slane %v1653, %v1657
          %v1659 = vlaneseq
          %v1660 = vshrl.u32 %v1659, 7
          %v1661 = vsub.s32 1, %v1660
          %v1662 = vrot.slane %v1653, %v1661
          %v1665 = vadd.f32 %v1621, %v1658
          %v1666 = vadd.f32 %v1622, %v1662
          %v1667 = vadd.f32 %v1623, %v1658
          %v1668 = vadd.f32 %v1624, %v1662
          %v1669 = vadd.f32 %v1625, %v1658
          %v1670 = vadd.f32 %v1626, %v1662
          %v1671 = vadd.f32 %v1627, %v1658
          %v1672 = vadd.f32 %v1628, %v1662
          %v1673 = vadd.f32 %v1629, %v1658
          %v1674 = vadd.f32 %v1630, %v1662
          %v1675 = vadd.f32 %v1631, %v1658
          %v1676 = vadd.f32 %v1632, %v1662
          %v1677 = vadd.f32 %v1633, %v1658
          %v1678 = vadd.f32 %v1634, %v1662
          %v1679 = vadd.f32 %v1635, %v1658
          %v1680 = vadd.f32 %v1636, %v1662
          %v1681 = vadd.f32 %v1637, %v1658
          %v1682 = vadd.f32 %v1638, %v1662
          %v1683 = vadd.f32 %v1639, %v1658
          %v1684 = vadd.f32 %v1640, %v1662
          %v1685 = vadd.f32 %v1641, %v1658
          %v1686 = vadd.f32 %v1642, %v1662
          %v1687 = vadd.f32 %v1643, %v1658
          %v1688 = vadd.f32 %v1644, %v1662
          %v1689 = vadd.f32 %v1645, %v1658
          %v1690 = vadd.f32 %v1646, %v1662
          %v1691 = vadd.f32 %v1647, %v1658
          %v1692 = vadd.f32 %v1648, %v1662
          %v1693 = vadd.f32 %v1649, %v1658
          %v1694 = vadd.f32 %v1650, %v1662
          %v1695 = vadd.f32 %v1651, %v1658
          %v1696 = vadd.f32 %v1652, %v1662
          %1697 = vst [vmem:[%s380] sm:$0xff] %v1665
          %1698 = vst [vmem:[%s380 + $0x8] sm:$0xff] %v1666
          %1699 = vst [vmem:[%s380 + $0x10] sm:$0xff] %v1667
          %1700 = vst [vmem:[%s380 + $0x18] sm:$0xff] %v1668
          %1701 = vst [vmem:[%s380 + $0x20] sm:$0xff] %v1669
          %1702 = vst [vmem:[%s380 + $0x28] sm:$0xff] %v1670
          %1703 = vst [vmem:[%s380 + $0x30] sm:$0xff] %v1671
          %1704 = vst [vmem:[%s380 + $0x38] sm:$0xff] %v1672
          %1705 = vst [vmem:[%s380 + $0x40] sm:$0xff] %v1673
          %1706 = vst [vmem:[%s380 + $0x48] sm:$0xff] %v1674
          %1707 = vst [vmem:[%s380 + $0x50] sm:$0xff] %v1675
          %1708 = vst [vmem:[%s380 + $0x58] sm:$0xff] %v1676
          %1709 = vst [vmem:[%s380 + $0x60] sm:$0xff] %v1677
          %1710 = vst [vmem:[%s380 + $0x68] sm:$0xff] %v1678
          %1711 = vst [vmem:[%s380 + $0x70] sm:$0xff] %v1679
          %1712 = vst [vmem:[%s380 + $0x78] sm:$0xff] %v1680
          %1713 = vst [vmem:[%s380 + $0x80] sm:$0xff] %v1681
          %1714 = vst [vmem:[%s380 + $0x88] sm:$0xff] %v1682
          %1715 = vst [vmem:[%s380 + $0x90] sm:$0xff] %v1683
          %1716 = vst [vmem:[%s380 + $0x98] sm:$0xff] %v1684
          %1717 = vst [vmem:[%s380 + $0xa0] sm:$0xff] %v1685
          %1718 = vst [vmem:[%s380 + $0xa8] sm:$0xff] %v1686
          %1719 = vst [vmem:[%s380 + $0xb0] sm:$0xff] %v1687
          %1720 = vst [vmem:[%s380 + $0xb8] sm:$0xff] %v1688
          %1721 = vst [vmem:[%s380 + $0xc0] sm:$0xff] %v1689
          %1722 = vst [vmem:[%s380 + $0xc8] sm:$0xff] %v1690
          %1723 = vst [vmem:[%s380 + $0xd0] sm:$0xff] %v1691
          %1724 = vst [vmem:[%s380 + $0xd8] sm:$0xff] %v1692
          %1725 = vst [vmem:[%s380 + $0xe0] sm:$0xff] %v1693
          %1726 = vst [vmem:[%s380 + $0xe8] sm:$0xff] %v1694
          %1727 = vst [vmem:[%s380 + $0xf0] sm:$0xff] %v1695
          %1728 = vst [vmem:[%s380 + $0xf8] sm:$0xff] %v1696
        $region64: #{sae_forward.1} parent=39 // pred_fallthru
          _
        %s1729 = sand.u32 %s175, 1
        %s1730 = scalar_lea.sflag [#allocation4], %s1729
        %s1731 = sand.u32 %s175, 1
        %s1732 = smul.addr %s1731, 256
        %s1733 = scalar_lea.vmem [#allocation8], %s1732
        %s1734 = sand.u32 %s203, 1
        %s1735 = scalar_lea.sflag [#allocation10], %s1734
        %s1736 = sand.u32 %s203, 1
        %s1737 = smul.addr %s1736, 512
        %s1738 = scalar_lea.vmem [#allocation9], %s1737
        // Predicated region
        $region65: #{sae_forward.1} parent=39 // pred_check
          %p1739 = pneg %p185
        $region66: #{sae_forward.1} parent=39 // pred_check_branch
          %1741 = sbr.rel (%p1739) target = $region68
        $region67: #{sae_forward.1} parent=39 // pred_region
          %s1742 = smul.u32 16, %s34
          %s1744 = ssub.s32 4096, 4096
          %1745 = vsyncadd %s1730, %s1744
          %s1746 = smul.addr %s1742, 2
          %s1747 = smul.addr %s1746, 128
          %s1748 = scalar_lea.hbm %s5, %s1747
          %s1749 = sshll.u32 %s1733, 4
          %s1750 = int_to_ptr.vmem [resolvable:$true] %s1749
          %1755 = dma.vmem_to_hbm [thread:$0]  %s1750, 4096, %s1748, %s1730, 256, 256, 16
        $region68: #{sae_forward.1} parent=39 // pred_fallthru
          _
        // Predicated region
        $region69: #{sae_forward.1} parent=39 // pred_check
          %p1756 = pneg %p213
        $region70: #{sae_forward.1} parent=39 // pred_check_branch
          %1758 = sbr.rel (%p1756) target = $region72
        $region71: #{sae_forward.1} parent=39 // pred_region
          %s1759 = smul.u32 16, %s34
          %s1760 = smul.u32 4, %s35
          %s1762 = ssub.s32 8192, 8192
          %1763 = vsyncadd %s1735, %s1762
          %s1764 = smul.addr %s1759, 8
          %s1765 = sadd.s32 %s1760, %s1764
          %s1766 = smul.addr %s1765, 128
          %s1767 = scalar_lea.hbm %s6, %s1766
          %s1768 = sshll.u32 %s1738, 4
          %s1769 = int_to_ptr.vmem [resolvable:$true] %s1768
          %1774 = dma.vmem_to_hbm [thread:$0]  %s1769, 8192, %s1767, %s1735, 512, 1024, 32
        $region72: #{sae_forward.1} parent=39 // pred_fallthru
          _
      $region40: #{sae_forward.1} parent=5 // pred_fallthru
        _
      %p1775 = scmp.le.s32.totalorder 2, %s25
      // Predicated region
      $region73: #{sae_forward.1} parent=5 // pred_check
        %p1776 = pneg %p1775
      $region74: #{sae_forward.1} parent=5 // pred_check_branch
        %1778 = sbr.rel (%p1776) target = $region76
      $region75: #{sae_forward.1} parent=5 // pred_region
        %s1779 = ssub.s32 %s25, 2
        // Predicated region
        $region77: #{sae_forward.1} parent=75 // pred_check
          %p1780 = pneg %p191
        $region78: #{sae_forward.1} parent=75 // pred_check_branch
          %1782 = sbr.rel (%p1780) target = $region80
        $region79: #{sae_forward.1} parent=75 // pred_region
          %s1783 = sand.u32 %s176, 1
          %s1784 = scalar_lea.sflag [#allocation4], %s1783
          %s1785 = sand.u32 %s176, 1
          %s1786 = smul.addr %s1785, 256
          %s1787 = scalar_lea.vmem [#allocation8], %s1786
          %1788 = dma.done %s1784, 4096
        $region80: #{sae_forward.1} parent=75 // pred_fallthru
          _
        // Predicated region
        $region81: #{sae_forward.1} parent=75 // pred_check
          %p1789 = pneg %p219
        $region82: #{sae_forward.1} parent=75 // pred_check_branch
          %1791 = sbr.rel (%p1789) target = $region84
        $region83: #{sae_forward.1} parent=75 // pred_region
          %s1792 = sand.u32 %s204, 1
          %s1793 = scalar_lea.sflag [#allocation10], %s1792
          %s1794 = sand.u32 %s204, 1
          %s1795 = smul.addr %s1794, 512
          %s1796 = scalar_lea.vmem [#allocation9], %s1795
          %1797 = dma.done %s1793, 8192
        $region84: #{sae_forward.1} parent=75 // pred_fallthru
          _
      $region76: #{sae_forward.1} parent=5 // pred_fallthru
        _
    $region6: #{sae_forward.1} parent=1 // loop_footer
      %s29 = sadd.s32 1, %s25
    $region7: #{sae_forward.1} parent=1 // loop_footer_branch
      %24 = sbr.rel target = $region3
    $region8: #{sae_forward.1} parent=1 // loop_exit
      _
    %1798 = vsyncpa [#allocation3], 1
    %s1799 = scalar_lea.sflag [#allocation3], 1
    %1800 = vsyncpa %s1799, 1
    %1801 = vsyncpa [#allocation6], 1
    %s1802 = scalar_lea.sflag [#allocation6], 1
    %1803 = vsyncpa %s1802, 1
    %1804 = vsyncpa [#allocation4], 1
    %s1805 = scalar_lea.sflag [#allocation4], 1
    %1806 = vsyncpa %s1805, 1
    %1807 = vsyncpa [#allocation10], 1
    %s1808 = scalar_lea.sflag [#allocation10], 1
    %1809 = vsyncpa %s1808, 1

</llo_original>
